<compile_context>
chip_gen: v6e
topology: v6e:2x2x1
jax: 0.10.0
libtpu: 0.0.40
codegen_flags: <defaults>
</compile_context>

<pallas_src>
import functools

import numpy as np
import jax
import jax.numpy as jnp
from jax.experimental import pallas as pl
from jax.experimental.pallas import tpu as pltpu


# ----------------------------- fused Pallas kernel ------------------------------

def fused_encoder_kernel(x_ref, keyrow_ref, padcol_ref,
                         wqkv_ref, bqkv_ref, wo_ref, bo_ref, ln1g_ref, ln1b_ref,
                         w1_ref, b1_ref, w2_ref, b2_ref, ln2g_ref, ln2b_ref,
                         pool_ref, attn_scr, *, n_head, d_k, d_v, B, L):
    """Whole encoder in one kernel invocation (no grid): all layers + final max-pool."""
    n_layers = wqkv_ref.shape[0]
    Hk = n_head * d_k
    Hv = n_head * d_v

    x = x_ref[...]                      # (B*L, D) f32 residual stream (kept f32 throughout)
    key_keep = keyrow_ref[...]          # (B, 1, L) : 1.0 where key is non-pad
    pad = padcol_ref[...]               # (B*L, 1) : zero out padded query rows

    def layer_norm(y, g, b):
        # one-pass statistics: var = E[y^2] - mu^2  (single sweep over the lane axis twice
        # folded into two cheap reductions on the same operand)
        mu = jnp.mean(y, axis=-1, keepdims=True)
        msq = jnp.mean(y * y, axis=-1, keepdims=True)
        inv = jax.lax.rsqrt(msq - mu * mu + 1e-5)
        return (y - mu) * inv * g + b

    for li in range(n_layers):          # static unroll: n_layers is small & known
        # ---------------- multi-head attention sub-layer ----------------
        x_b = x.astype(jnp.bfloat16)
        # fused QKV projection on (B*L, D): one dot, N = 2*Hk + Hv
        qkv = jnp.dot(x_b, wqkv_ref[li],
                      preferred_element_type=jnp.float32) + bqkv_ref[li]
        q = qkv[:, :Hk].reshape(B, L, Hk)         # q already carries the 1/sqrt(d_k) scale
        k = qkv[:, Hk:2 * Hk].reshape(B, L, Hk)
        v = qkv[:, 2 * Hk:].reshape(B, L, Hv)

        for h in range(n_head):                   # static unroll over heads
            qh = q[:, :, h * d_k:(h + 1) * d_k].astype(jnp.bfloat16)
            kh = k[:, :, h * d_k:(h + 1) * d_k].astype(jnp.bfloat16)
            vh = v[:, :, h * d_v:(h + 1) * d_v].astype(jnp.bfloat16)
            # scores batched over B in a single einsum (key-pad mask is per batch element)
            s = jnp.einsum('bqd,bkd->bqk', qh, kh,
                           preferred_element_type=jnp.float32)
            s = jnp.where(key_keep > 0.0, s, jnp.float32(-1e9))
            s = s - jnp.max(s, axis=-1, keepdims=True)
            p = jnp.exp(s)
            p = p * pl.reciprocal(jnp.sum(p, axis=-1, keepdims=True), approx=True)
            oh = jnp.einsum('bqk,bkd->bqd', p.astype(jnp.bfloat16), vh,
                            preferred_element_type=jnp.float32)
            # write this head's output into the VMEM scratch slab (no concatenate)
            attn_scr[:, h * d_v:(h + 1) * d_v] = oh.reshape(B * L, d_v)

        o = jnp.dot(attn_scr[...].astype(jnp.bfloat16), wo_ref[li],
                    preferred_element_type=jnp.float32) + bo_ref[li]
        # TODO(synk): dropout(p=0.1) omitted -- inference (eval) semantics.
        y = layer_norm(o + x, ln1g_ref[li], ln1b_ref[li])
        x = y * pad                               # zero padded query rows

        # ---------------- position-wise feed-forward sub-layer ----------------
        h1 = jnp.dot(x.astype(jnp.bfloat16), w1_ref[li],
                     preferred_element_type=jnp.float32) + b1_ref[li]
        h1 = jnp.maximum(h1, 0.0)
        y2 = jnp.dot(h1.astype(jnp.bfloat16), w2_ref[li],
                     preferred_element_type=jnp.float32) + b2_ref[li]
        y2 = layer_norm(y2 + x, ln2g_ref[li], ln2b_ref[li])
        x = y2 * pad

    # torch.max(res, dim=1)[0] fused: max over the sequence for each batch element.
    for b in range(B):
        pool_ref[pl.ds(b, 1), :] = jnp.max(x[b * L:(b + 1) * L, :], axis=0, keepdims=True)


# --------------------------- pallas_call wrapper ---------------------------

def transfo_enc_forward(params, tokens, *, n_head, d_k, d_v):
    B, L = tokens.shape
    D = params["emb"].shape[1]
    Hv = n_head * d_v

    pos = jnp.tile(jnp.arange(1, L + 1, dtype=jnp.int32)[None, :], (B, 1))
    keep = (tokens != 0).astype(jnp.float32)          # (B, L)
    key_row = keep[:, None, :]                        # (B, 1, L) key-pad keep mask
    pad_col = keep.reshape(B * L, 1)                  # (B*L, 1) non-pad multiplier

    # Embedding gather stays in XLA (data-dependent row gather); everything else is fused.
    x = jnp.take(params["emb"], tokens, axis=0) + jnp.take(params["pos_table"], pos, axis=0)
    x = x.reshape(B * L, D)                           # f32; batch flattened into matmul M

    kernel = functools.partial(fused_encoder_kernel, n_head=n_head, d_k=d_k,
                               d_v=d_v, B=B, L=L)
    vmem = pltpu.MemorySpace.VMEM
    pooled = pl.pallas_call(
        kernel,
        out_shape=jax.ShapeDtypeStruct((B, D), jnp.float32),
        in_specs=[pl.BlockSpec(memory_space=vmem)] * 15,
        out_specs=pl.BlockSpec(memory_space=vmem),
        scratch_shapes=[pltpu.VMEM((B * L, Hv), jnp.float32)],
        compiler_params=pltpu.CompilerParams(vmem_limit_bytes=32 * 1024 * 1024),
    )(x, key_row, pad_col,
      params["wqkv"], params["bqkv"], params["wo"], params["bo"],
      params["ln1_g"], params["ln1_b"],
      params["w1"], params["b1"], params["w2"], params["b2"],
      params["ln2_g"], params["ln2_b"])
    return pooled


# --------------------------- params (glue in JAX) ----------------------------

def sinusoid_table(n_position, d_hid):
    position = np.arange(n_position, dtype=np.float64)[:, None]
    div = np.power(10000.0, 2.0 * (np.arange(d_hid) // 2) / d_hid)[None, :]
    table = position / div
    table[:, 0::2] = np.sin(table[:, 0::2])
    table[:, 1::2] = np.cos(table[:, 1::2])
    table[0, :] = 0.0  # padding_idx = 0
    return jnp.asarray(table, jnp.float32)


def init_params(key, n_src_vocab, len_max_seq, d_word_vec, n_layers, n_head,
                d_k, d_v, d_model, d_inner):
    keys = jax.random.split(key, 1 + n_layers)

    def nrm(k, shape, scale=0.02):
        return jax.random.normal(k, shape, jnp.float32) * scale

    emb = nrm(keys[0], (n_src_vocab, d_word_vec)).at[0].set(0.0)  # padding_idx = 0
    Hk, Hv = n_head * d_k, n_head * d_v
    q_scale = 1.0 / float(np.sqrt(d_k))   # softmax scale baked into the q projection

    wqkv, bqkv, wo, bo, ln1g, ln1b = [], [], [], [], [], []
    w1, b1, w2, b2, ln2g, ln2b = [], [], [], [], [], []
    for li in range(n_layers):
        lk = jax.random.split(keys[1 + li], 6)
        w_qs = nrm(lk[0], (d_model, Hk)) * q_scale          # scale baked in (bias is zero,
        w_ks = nrm(lk[1], (d_model, Hk))                    # else it would be scaled too)
        w_vs = nrm(lk[2], (d_model, Hv))
        wqkv.append(jnp.concatenate([w_qs, w_ks, w_vs], axis=1))
        bqkv.append(jnp.zeros((1, 2 * Hk + Hv), jnp.float32))
        wo.append(nrm(lk[3], (Hv, d_model)))
        bo.append(jnp.zeros((1, d_model), jnp.float32))
        ln1g.append(jnp.ones((1, d_model), jnp.float32))
        ln1b.append(jnp.zeros((1, d_model), jnp.float32))
        w1.append(nrm(lk[4], (d_model, d_inner)))
        b1.append(jnp.zeros((1, d_inner), jnp.float32))
        w2.append(nrm(lk[5], (d_inner, d_model)))
        b2.append(jnp.zeros((1, d_model), jnp.float32))
        ln2g.append(jnp.ones((1, d_model), jnp.float32))
        ln2b.append(jnp.zeros((1, d_model), jnp.float32))

    bf16 = jnp.bfloat16
    return {
        "emb": emb,
        "pos_table": sinusoid_table(len_max_seq + 1, d_word_vec),
        # MXU operands stored bf16 (f32 accumulation in-kernel); biases / LN params f32.
        "wqkv": jnp.stack(wqkv).astype(bf16), "bqkv": jnp.stack(bqkv),
        "wo": jnp.stack(wo).astype(bf16), "bo": jnp.stack(bo),
        "ln1_g": jnp.stack(ln1g), "ln1_b": jnp.stack(ln1b),
        "w1": jnp.stack(w1).astype(bf16), "b1": jnp.stack(b1),
        "w2": jnp.stack(w2).astype(bf16), "b2": jnp.stack(b2),
        "ln2_g": jnp.stack(ln2g), "ln2_b": jnp.stack(ln2b),
    }


# --------------------------------- main -------------------------------------

if __name__ == "__main__":
    # Small, module-consistent sizes.
    n_src_vocab, len_max_seq = 50, 16
    d_word_vec = d_model = 32
    n_layers, n_head, d_k, d_v, d_inner = 2, 2, 8, 8, 64
    batch, seq = 2, 8

    key = jax.random.PRNGKey(0)
    pkey, tkey = jax.random.split(key)
    params = init_params(pkey, n_src_vocab, len_max_seq, d_word_vec,
                         n_layers, n_head, d_k, d_v, d_model, d_inner)

    # Equal-length sequences -> pad_sequence is a no-op stack; tokens in [1, vocab)
    # so the non-pad / key-pad masks are all-ones (semantics still computed).
    tokens = jax.random.randint(tkey, (batch, seq), 1, n_src_vocab, dtype=jnp.int32)

    fwd = jax.jit(functools.partial(transfo_enc_forward, n_head=n_head, d_k=d_k, d_v=d_v))
    out = fwd(params, tokens)
    jax.block_until_ready(out)
    assert out.shape == (batch, d_model), out.shape
    assert bool(jnp.all(jnp.isfinite(out)))
    print("KERNEL_OK")
</pallas_src>

<mosaic_0001>
module attributes {stable_mosaic.version = 11 : i64} {
  func.func @fused_encoder_kernel(%arg0: memref<16x32xf32, #tpu.memory_space<vmem>>, %arg1: memref<2x1x8xf32, #tpu.memory_space<vmem>>, %arg2: memref<16x1xf32, #tpu.memory_space<vmem>>, %arg3: memref<2x32x48xbf16, #tpu.memory_space<vmem>>, %arg4: memref<2x1x48xf32, #tpu.memory_space<vmem>>, %arg5: memref<2x16x32xbf16, #tpu.memory_space<vmem>>, %arg6: memref<2x1x32xf32, #tpu.memory_space<vmem>>, %arg7: memref<2x1x32xf32, #tpu.memory_space<vmem>>, %arg8: memref<2x1x32xf32, #tpu.memory_space<vmem>>, %arg9: memref<2x32x64xbf16, #tpu.memory_space<vmem>>, %arg10: memref<2x1x64xf32, #tpu.memory_space<vmem>>, %arg11: memref<2x64x32xbf16, #tpu.memory_space<vmem>>, %arg12: memref<2x1x32xf32, #tpu.memory_space<vmem>>, %arg13: memref<2x1x32xf32, #tpu.memory_space<vmem>>, %arg14: memref<2x1x32xf32, #tpu.memory_space<vmem>>, %arg15: memref<2x32xf32, #tpu.memory_space<vmem>>, %arg16: memref<16x16xf32, #tpu.memory_space<vmem>>) attributes {dimension_semantics = [], scalar_prefetch = 0 : i64, scratch_operands = 1 : i64, tpu.core_type = #tpu.core_type<tc>} {
    %c0 = arith.constant 0 : index
    %c0_0 = arith.constant 0 : index
    %0 = vector.load %arg0[%c0, %c0_0] : memref<16x32xf32, #tpu.memory_space<vmem>>, vector<16x32xf32>
    %c0_1 = arith.constant 0 : index
    %c0_2 = arith.constant 0 : index
    %c0_3 = arith.constant 0 : index
    %1 = vector.load %arg1[%c0_1, %c0_2, %c0_3] : memref<2x1x8xf32, #tpu.memory_space<vmem>>, vector<2x1x8xf32>
    %c0_4 = arith.constant 0 : index
    %c0_5 = arith.constant 0 : index
    %2 = vector.load %arg2[%c0_4, %c0_5] : memref<16x1xf32, #tpu.memory_space<vmem>>, vector<16x1xf32>
    %3 = arith.truncf %0 : vector<16x32xf32> to vector<16x32xbf16>
    %c0_6 = arith.constant 0 : index
    %c0_7 = arith.constant 0 : index
    %c0_8 = arith.constant 0 : index
    %4 = vector.load %arg3[%c0_6, %c0_7, %c0_8] : memref<2x32x48xbf16, #tpu.memory_space<vmem>>, vector<1x32x48xbf16>
    %5 = vector.shape_cast %4 : vector<1x32x48xbf16> to vector<32x48xbf16>
    %cst = arith.constant dense<0.000000e+00> : vector<16x48xf32>
    %6 = tpu.matmul %3, %5, %cst {dimension_numbers = #tpu.dot_dimension_numbers<[1], [0], [0], [1], [0, 0, 1, 1], [], []>} : vector<16x32xbf16>, vector<32x48xbf16>, vector<16x48xf32> -> vector<16x48xf32>
    %c0_9 = arith.constant 0 : index
    %c0_10 = arith.constant 0 : index
    %c0_11 = arith.constant 0 : index
    %7 = vector.load %arg4[%c0_9, %c0_10, %c0_11] : memref<2x1x48xf32, #tpu.memory_space<vmem>>, vector<1x1x48xf32>
    %8 = vector.shape_cast %7 : vector<1x1x48xf32> to vector<1x48xf32>
    %9 = vector.broadcast %8 : vector<1x48xf32> to vector<16x48xf32>
    %10 = arith.addf %6, %9 : vector<16x48xf32>
    %11 = vector.extract_strided_slice %10 {offsets = [0, 0], sizes = [16, 16], strides = [1, 1]} : vector<16x48xf32> to vector<16x16xf32>
    %12 = vector.shape_cast %11 : vector<16x16xf32> to vector<2x8x16xf32>
    %13 = vector.extract_strided_slice %10 {offsets = [0, 16], sizes = [16, 16], strides = [1, 1]} : vector<16x48xf32> to vector<16x16xf32>
    %14 = vector.shape_cast %13 : vector<16x16xf32> to vector<2x8x16xf32>
    %15 = vector.extract_strided_slice %10 {offsets = [0, 32], sizes = [16, 16], strides = [1, 1]} : vector<16x48xf32> to vector<16x16xf32>
    %16 = vector.shape_cast %15 : vector<16x16xf32> to vector<2x8x16xf32>
    %17 = vector.extract_strided_slice %12 {offsets = [0, 0, 0], sizes = [2, 8, 8], strides = [1, 1, 1]} : vector<2x8x16xf32> to vector<2x8x8xf32>
    %18 = arith.truncf %17 : vector<2x8x8xf32> to vector<2x8x8xbf16>
    %19 = vector.extract_strided_slice %14 {offsets = [0, 0, 0], sizes = [2, 8, 8], strides = [1, 1, 1]} : vector<2x8x16xf32> to vector<2x8x8xf32>
    %20 = arith.truncf %19 : vector<2x8x8xf32> to vector<2x8x8xbf16>
    %21 = vector.extract_strided_slice %16 {offsets = [0, 0, 0], sizes = [2, 8, 8], strides = [1, 1, 1]} : vector<2x8x16xf32> to vector<2x8x8xf32>
    %22 = arith.truncf %21 : vector<2x8x8xf32> to vector<2x8x8xbf16>
    "tpu.trace_start"() <{level = 10 : i32, message = "bqd,bkd->bqk"}> : () -> ()
    %cst_12 = arith.constant dense<0.000000e+00> : vector<2x8x8xf32>
    %23 = tpu.matmul %18, %20, %cst_12 {dimension_numbers = #tpu.dot_dimension_numbers<[2], [2], [1], [1], [0, 0, 0, 1, 1, 1], [0], [0]>} : vector<2x8x8xbf16>, vector<2x8x8xbf16>, vector<2x8x8xf32> -> vector<2x8x8xf32>
    %cst_13 = arith.constant 0.000000e+00 : f32
    "tpu.trace_stop"() : () -> ()
    %24 = vector.broadcast %cst_13 : f32 to vector<2x1x8xf32>
    %25 = arith.cmpf ogt, %1, %24 : vector<2x1x8xf32>
    %cst_14 = arith.constant -1.000000e+09 : f32
    %26 = vector.shape_cast %25 : vector<2x1x8xi1> to vector<2x1x8xi1>
    %27 = vector.broadcast %26 : vector<2x1x8xi1> to vector<2x8x8xi1>
    %28 = vector.broadcast %cst_14 : f32 to vector<2x8x8xf32>
    %29 = arith.select %27, %23, %28 : vector<2x8x8xi1>, vector<2x8x8xf32>
    %cst_15 = arith.constant dense<0xFF800000> : vector<2x8xf32>
    %30 = vector.multi_reduction <maximumf>, %29, %cst_15 [2] : vector<2x8x8xf32> to vector<2x8xf32>
    %31 = vector.shape_cast %30 : vector<2x8xf32> to vector<2x8x1xf32>
    %32 = vector.broadcast %31 : vector<2x8x1xf32> to vector<2x8x8xf32>
    %33 = arith.subf %29, %32 : vector<2x8x8xf32>
    %34 = math.exp %33 : vector<2x8x8xf32>
    %cst_16 = arith.constant dense<0.000000e+00> : vector<2x8xf32>
    %35 = vector.multi_reduction <add>, %34, %cst_16 [2] : vector<2x8x8xf32> to vector<2x8xf32>
    %36 = vector.shape_cast %35 : vector<2x8xf32> to vector<2x8x1xf32>
    %37 = tpu.reciprocal %36 {approx = true} : vector<2x8x1xf32> -> vector<2x8x1xf32>
    %38 = vector.broadcast %37 : vector<2x8x1xf32> to vector<2x8x8xf32>
    %39 = arith.mulf %34, %38 : vector<2x8x8xf32>
    %40 = arith.truncf %39 : vector<2x8x8xf32> to vector<2x8x8xbf16>
    "tpu.trace_start"() <{level = 10 : i32, message = "bqk,bkd->bqd"}> : () -> ()
    %cst_17 = arith.constant dense<0.000000e+00> : vector<2x8x8xf32>
    %41 = tpu.matmul %40, %22, %cst_17 {dimension_numbers = #tpu.dot_dimension_numbers<[2], [1], [1], [2], [0, 0, 0, 1, 1, 2], [0], [0]>} : vector<2x8x8xbf16>, vector<2x8x8xbf16>, vector<2x8x8xf32> -> vector<2x8x8xf32>
    "tpu.trace_stop"() : () -> ()
    %42 = vector.shape_cast %41 : vector<2x8x8xf32> to vector<16x8xf32>
    %c0_18 = arith.constant 0 : index
    %c0_19 = arith.constant 0 : index
    %43 = vector.load %arg16[%c0_18, %c0_19] : memref<16x16xf32, #tpu.memory_space<vmem>>, vector<16x8xf32>
    tpu.vector_store %arg16[%c0_18, %c0_19], %42 {strides = array<i32>} : memref<16x16xf32, #tpu.memory_space<vmem>>, vector<16x8xf32>,
    %44 = vector.extract_strided_slice %12 {offsets = [0, 0, 8], sizes = [2, 8, 8], strides = [1, 1, 1]} : vector<2x8x16xf32> to vector<2x8x8xf32>
    %45 = arith.truncf %44 : vector<2x8x8xf32> to vector<2x8x8xbf16>
    %46 = vector.extract_strided_slice %14 {offsets = [0, 0, 8], sizes = [2, 8, 8], strides = [1, 1, 1]} : vector<2x8x16xf32> to vector<2x8x8xf32>
    %47 = arith.truncf %46 : vector<2x8x8xf32> to vector<2x8x8xbf16>
    %48 = vector.extract_strided_slice %16 {offsets = [0, 0, 8], sizes = [2, 8, 8], strides = [1, 1, 1]} : vector<2x8x16xf32> to vector<2x8x8xf32>
    %49 = arith.truncf %48 : vector<2x8x8xf32> to vector<2x8x8xbf16>
    "tpu.trace_start"() <{level = 10 : i32, message = "bqd,bkd->bqk"}> : () -> ()
    %cst_20 = arith.constant dense<0.000000e+00> : vector<2x8x8xf32>
    %50 = tpu.matmul %45, %47, %cst_20 {dimension_numbers = #tpu.dot_dimension_numbers<[2], [2], [1], [1], [0, 0, 0, 1, 1, 1], [0], [0]>} : vector<2x8x8xbf16>, vector<2x8x8xbf16>, vector<2x8x8xf32> -> vector<2x8x8xf32>
    %cst_21 = arith.constant 0.000000e+00 : f32
    "tpu.trace_stop"() : () -> ()
    %51 = vector.broadcast %cst_21 : f32 to vector<2x1x8xf32>
    %52 = arith.cmpf ogt, %1, %51 : vector<2x1x8xf32>
    %cst_22 = arith.constant -1.000000e+09 : f32
    %53 = vector.shape_cast %52 : vector<2x1x8xi1> to vector<2x1x8xi1>
    %54 = vector.broadcast %53 : vector<2x1x8xi1> to vector<2x8x8xi1>
    %55 = vector.broadcast %cst_22 : f32 to vector<2x8x8xf32>
    %56 = arith.select %54, %50, %55 : vector<2x8x8xi1>, vector<2x8x8xf32>
    %cst_23 = arith.constant dense<0xFF800000> : vector<2x8xf32>
    %57 = vector.multi_reduction <maximumf>, %56, %cst_23 [2] : vector<2x8x8xf32> to vector<2x8xf32>
    %58 = vector.shape_cast %57 : vector<2x8xf32> to vector<2x8x1xf32>
    %59 = vector.broadcast %58 : vector<2x8x1xf32> to vector<2x8x8xf32>
    %60 = arith.subf %56, %59 : vector<2x8x8xf32>
    %61 = math.exp %60 : vector<2x8x8xf32>
    %cst_24 = arith.constant dense<0.000000e+00> : vector<2x8xf32>
    %62 = vector.multi_reduction <add>, %61, %cst_24 [2] : vector<2x8x8xf32> to vector<2x8xf32>
    %63 = vector.shape_cast %62 : vector<2x8xf32> to vector<2x8x1xf32>
    %64 = tpu.reciprocal %63 {approx = true} : vector<2x8x1xf32> -> vector<2x8x1xf32>
    %65 = vector.broadcast %64 : vector<2x8x1xf32> to vector<2x8x8xf32>
    %66 = arith.mulf %61, %65 : vector<2x8x8xf32>
    %67 = arith.truncf %66 : vector<2x8x8xf32> to vector<2x8x8xbf16>
    "tpu.trace_start"() <{level = 10 : i32, message = "bqk,bkd->bqd"}> : () -> ()
    %cst_25 = arith.constant dense<0.000000e+00> : vector<2x8x8xf32>
    %68 = tpu.matmul %67, %49, %cst_25 {dimension_numbers = #tpu.dot_dimension_numbers<[2], [1], [1], [2], [0, 0, 0, 1, 1, 2], [0], [0]>} : vector<2x8x8xbf16>, vector<2x8x8xbf16>, vector<2x8x8xf32> -> vector<2x8x8xf32>
    "tpu.trace_stop"() : () -> ()
    %69 = vector.shape_cast %68 : vector<2x8x8xf32> to vector<16x8xf32>
    %c0_26 = arith.constant 0 : index
    %c8 = arith.constant 8 : index
    %70 = vector.load %arg16[%c0_26, %c8] : memref<16x16xf32, #tpu.memory_space<vmem>>, vector<16x8xf32>
    tpu.vector_store %arg16[%c0_26, %c8], %69 {strides = array<i32>} : memref<16x16xf32, #tpu.memory_space<vmem>>, vector<16x8xf32>,
    %c0_27 = arith.constant 0 : index
    %c0_28 = arith.constant 0 : index
    %71 = vector.load %arg16[%c0_27, %c0_28] : memref<16x16xf32, #tpu.memory_space<vmem>>, vector<16x16xf32>
    %72 = arith.truncf %71 : vector<16x16xf32> to vector<16x16xbf16>
    %c0_29 = arith.constant 0 : index
    %c0_30 = arith.constant 0 : index
    %c0_31 = arith.constant 0 : index
    %73 = vector.load %arg5[%c0_29, %c0_30, %c0_31] : memref<2x16x32xbf16, #tpu.memory_space<vmem>>, vector<1x16x32xbf16>
    %74 = vector.shape_cast %73 : vector<1x16x32xbf16> to vector<16x32xbf16>
    %cst_32 = arith.constant dense<0.000000e+00> : vector<16x32xf32>
    %75 = tpu.matmul %72, %74, %cst_32 {dimension_numbers = #tpu.dot_dimension_numbers<[1], [0], [0], [1], [0, 0, 1, 1], [], []>} : vector<16x16xbf16>, vector<16x32xbf16>, vector<16x32xf32> -> vector<16x32xf32>
    %c0_33 = arith.constant 0 : index
    %c0_34 = arith.constant 0 : index
    %c0_35 = arith.constant 0 : index
    %76 = vector.load %arg6[%c0_33, %c0_34, %c0_35] : memref<2x1x32xf32, #tpu.memory_space<vmem>>, vector<1x1x32xf32>
    %77 = vector.shape_cast %76 : vector<1x1x32xf32> to vector<1x32xf32>
    %78 = vector.broadcast %77 : vector<1x32xf32> to vector<16x32xf32>
    %79 = arith.addf %75, %78 : vector<16x32xf32>
    %80 = arith.addf %79, %0 : vector<16x32xf32>
    %c0_36 = arith.constant 0 : index
    %c0_37 = arith.constant 0 : index
    %c0_38 = arith.constant 0 : index
    %81 = vector.load %arg7[%c0_36, %c0_37, %c0_38] : memref<2x1x32xf32, #tpu.memory_space<vmem>>, vector<1x1x32xf32>
    %82 = vector.shape_cast %81 : vector<1x1x32xf32> to vector<1x32xf32>
    %c0_39 = arith.constant 0 : index
    %c0_40 = arith.constant 0 : index
    %c0_41 = arith.constant 0 : index
    %83 = vector.load %arg8[%c0_39, %c0_40, %c0_41] : memref<2x1x32xf32, #tpu.memory_space<vmem>>, vector<1x1x32xf32>
    %84 = vector.shape_cast %83 : vector<1x1x32xf32> to vector<1x32xf32>
    %cst_42 = arith.constant dense<0.000000e+00> : vector<16xf32>
    %85 = vector.multi_reduction <add>, %80, %cst_42 [1] : vector<16x32xf32> to vector<16xf32>
    %86 = vector.shape_cast %85 : vector<16xf32> to vector<16x1xf32>
    %cst_43 = arith.constant 3.200000e+01 : f32
    %87 = vector.broadcast %cst_43 : f32 to vector<16x1xf32>
    %88 = arith.divf %86, %87 : vector<16x1xf32>
    %89 = arith.mulf %80, %80 : vector<16x32xf32>
    %cst_44 = arith.constant dense<0.000000e+00> : vector<16xf32>
    %90 = vector.multi_reduction <add>, %89, %cst_44 [1] : vector<16x32xf32> to vector<16xf32>
    %91 = vector.shape_cast %90 : vector<16xf32> to vector<16x1xf32>
    %cst_45 = arith.constant 3.200000e+01 : f32
    %92 = vector.broadcast %cst_45 : f32 to vector<16x1xf32>
    %93 = arith.divf %91, %92 : vector<16x1xf32>
    %94 = arith.mulf %88, %88 : vector<16x1xf32>
    %95 = arith.subf %93, %94 : vector<16x1xf32>
    %cst_46 = arith.constant 9.99999974E-6 : f32
    %96 = vector.broadcast %cst_46 : f32 to vector<16x1xf32>
    %97 = arith.addf %95, %96 : vector<16x1xf32>
    %98 = math.rsqrt %97 : vector<16x1xf32>
    %99 = vector.broadcast %88 : vector<16x1xf32> to vector<16x32xf32>
    %100 = arith.subf %80, %99 : vector<16x32xf32>
    %101 = vector.broadcast %98 : vector<16x1xf32> to vector<16x32xf32>
    %102 = arith.mulf %100, %101 : vector<16x32xf32>
    %103 = vector.broadcast %82 : vector<1x32xf32> to vector<16x32xf32>
    %104 = arith.mulf %102, %103 : vector<16x32xf32>
    %105 = vector.broadcast %84 : vector<1x32xf32> to vector<16x32xf32>
    %106 = arith.addf %104, %105 : vector<16x32xf32>
    %107 = vector.broadcast %2 : vector<16x1xf32> to vector<16x32xf32>
    %108 = arith.mulf %106, %107 : vector<16x32xf32>
    %109 = arith.truncf %108 : vector<16x32xf32> to vector<16x32xbf16>
    %c0_47 = arith.constant 0 : index
    %c0_48 = arith.constant 0 : index
    %c0_49 = arith.constant 0 : index
    %110 = vector.load %arg9[%c0_47, %c0_48, %c0_49] : memref<2x32x64xbf16, #tpu.memory_space<vmem>>, vector<1x32x64xbf16>
    %111 = vector.shape_cast %110 : vector<1x32x64xbf16> to vector<32x64xbf16>
    %cst_50 = arith.constant dense<0.000000e+00> : vector<16x64xf32>
    %112 = tpu.matmul %109, %111, %cst_50 {dimension_numbers = #tpu.dot_dimension_numbers<[1], [0], [0], [1], [0, 0, 1, 1], [], []>} : vector<16x32xbf16>, vector<32x64xbf16>, vector<16x64xf32> -> vector<16x64xf32>
    %c0_51 = arith.constant 0 : index
    %c0_52 = arith.constant 0 : index
    %c0_53 = arith.constant 0 : index
    %113 = vector.load %arg10[%c0_51, %c0_52, %c0_53] : memref<2x1x64xf32, #tpu.memory_space<vmem>>, vector<1x1x64xf32>
    %114 = vector.shape_cast %113 : vector<1x1x64xf32> to vector<1x64xf32>
    %115 = vector.broadcast %114 : vector<1x64xf32> to vector<16x64xf32>
    %116 = arith.addf %112, %115 : vector<16x64xf32>
    %cst_54 = arith.constant 0.000000e+00 : f32
    %117 = vector.broadcast %cst_54 : f32 to vector<16x64xf32>
    %118 = arith.maximumf %116, %117 : vector<16x64xf32>
    %119 = arith.truncf %118 : vector<16x64xf32> to vector<16x64xbf16>
    %c0_55 = arith.constant 0 : index
    %c0_56 = arith.constant 0 : index
    %c0_57 = arith.constant 0 : index
    %120 = vector.load %arg11[%c0_55, %c0_56, %c0_57] : memref<2x64x32xbf16, #tpu.memory_space<vmem>>, vector<1x64x32xbf16>
    %121 = vector.shape_cast %120 : vector<1x64x32xbf16> to vector<64x32xbf16>
    %cst_58 = arith.constant dense<0.000000e+00> : vector<16x32xf32>
    %122 = tpu.matmul %119, %121, %cst_58 {dimension_numbers = #tpu.dot_dimension_numbers<[1], [0], [0], [1], [0, 0, 1, 1], [], []>} : vector<16x64xbf16>, vector<64x32xbf16>, vector<16x32xf32> -> vector<16x32xf32>
    %c0_59 = arith.constant 0 : index
    %c0_60 = arith.constant 0 : index
    %c0_61 = arith.constant 0 : index
    %123 = vector.load %arg12[%c0_59, %c0_60, %c0_61] : memref<2x1x32xf32, #tpu.memory_space<vmem>>, vector<1x1x32xf32>
    %124 = vector.shape_cast %123 : vector<1x1x32xf32> to vector<1x32xf32>
    %125 = vector.broadcast %124 : vector<1x32xf32> to vector<16x32xf32>
    %126 = arith.addf %122, %125 : vector<16x32xf32>
    %127 = arith.addf %126, %108 : vector<16x32xf32>
    %c0_62 = arith.constant 0 : index
    %c0_63 = arith.constant 0 : index
    %c0_64 = arith.constant 0 : index
    %128 = vector.load %arg13[%c0_62, %c0_63, %c0_64] : memref<2x1x32xf32, #tpu.memory_space<vmem>>, vector<1x1x32xf32>
    %129 = vector.shape_cast %128 : vector<1x1x32xf32> to vector<1x32xf32>
    %c0_65 = arith.constant 0 : index
    %c0_66 = arith.constant 0 : index
    %c0_67 = arith.constant 0 : index
    %130 = vector.load %arg14[%c0_65, %c0_66, %c0_67] : memref<2x1x32xf32, #tpu.memory_space<vmem>>, vector<1x1x32xf32>
    %131 = vector.shape_cast %130 : vector<1x1x32xf32> to vector<1x32xf32>
    %cst_68 = arith.constant dense<0.000000e+00> : vector<16xf32>
    %132 = vector.multi_reduction <add>, %127, %cst_68 [1] : vector<16x32xf32> to vector<16xf32>
    %133 = vector.shape_cast %132 : vector<16xf32> to vector<16x1xf32>
    %cst_69 = arith.constant 3.200000e+01 : f32
    %134 = vector.broadcast %cst_69 : f32 to vector<16x1xf32>
    %135 = arith.divf %133, %134 : vector<16x1xf32>
    %136 = arith.mulf %127, %127 : vector<16x32xf32>
    %cst_70 = arith.constant dense<0.000000e+00> : vector<16xf32>
    %137 = vector.multi_reduction <add>, %136, %cst_70 [1] : vector<16x32xf32> to vector<16xf32>
    %138 = vector.shape_cast %137 : vector<16xf32> to vector<16x1xf32>
    %cst_71 = arith.constant 3.200000e+01 : f32
    %139 = vector.broadcast %cst_71 : f32 to vector<16x1xf32>
    %140 = arith.divf %138, %139 : vector<16x1xf32>
    %141 = arith.mulf %135, %135 : vector<16x1xf32>
    %142 = arith.subf %140, %141 : vector<16x1xf32>
    %cst_72 = arith.constant 9.99999974E-6 : f32
    %143 = vector.broadcast %cst_72 : f32 to vector<16x1xf32>
    %144 = arith.addf %142, %143 : vector<16x1xf32>
    %145 = math.rsqrt %144 : vector<16x1xf32>
    %146 = vector.broadcast %135 : vector<16x1xf32> to vector<16x32xf32>
    %147 = arith.subf %127, %146 : vector<16x32xf32>
    %148 = vector.broadcast %145 : vector<16x1xf32> to vector<16x32xf32>
    %149 = arith.mulf %147, %148 : vector<16x32xf32>
    %150 = vector.broadcast %129 : vector<1x32xf32> to vector<16x32xf32>
    %151 = arith.mulf %149, %150 : vector<16x32xf32>
    %152 = vector.broadcast %131 : vector<1x32xf32> to vector<16x32xf32>
    %153 = arith.addf %151, %152 : vector<16x32xf32>
    %154 = vector.broadcast %2 : vector<16x1xf32> to vector<16x32xf32>
    %155 = arith.mulf %153, %154 : vector<16x32xf32>
    %156 = arith.truncf %155 : vector<16x32xf32> to vector<16x32xbf16>
    %c1 = arith.constant 1 : index
    %c0_73 = arith.constant 0 : index
    %c0_74 = arith.constant 0 : index
    %157 = vector.load %arg3[%c1, %c0_73, %c0_74] : memref<2x32x48xbf16, #tpu.memory_space<vmem>>, vector<1x32x48xbf16>
    %158 = vector.shape_cast %157 : vector<1x32x48xbf16> to vector<32x48xbf16>
    %cst_75 = arith.constant dense<0.000000e+00> : vector<16x48xf32>
    %159 = tpu.matmul %156, %158, %cst_75 {dimension_numbers = #tpu.dot_dimension_numbers<[1], [0], [0], [1], [0, 0, 1, 1], [], []>} : vector<16x32xbf16>, vector<32x48xbf16>, vector<16x48xf32> -> vector<16x48xf32>
    %c1_76 = arith.constant 1 : index
    %c0_77 = arith.constant 0 : index
    %c0_78 = arith.constant 0 : index
    %160 = vector.load %arg4[%c1_76, %c0_77, %c0_78] : memref<2x1x48xf32, #tpu.memory_space<vmem>>, vector<1x1x48xf32>
    %161 = vector.shape_cast %160 : vector<1x1x48xf32> to vector<1x48xf32>
    %162 = vector.broadcast %161 : vector<1x48xf32> to vector<16x48xf32>
    %163 = arith.addf %159, %162 : vector<16x48xf32>
    %164 = vector.extract_strided_slice %163 {offsets = [0, 0], sizes = [16, 16], strides = [1, 1]} : vector<16x48xf32> to vector<16x16xf32>
    %165 = vector.shape_cast %164 : vector<16x16xf32> to vector<2x8x16xf32>
    %166 = vector.extract_strided_slice %163 {offsets = [0, 16], sizes = [16, 16], strides = [1, 1]} : vector<16x48xf32> to vector<16x16xf32>
    %167 = vector.shape_cast %166 : vector<16x16xf32> to vector<2x8x16xf32>
    %168 = vector.extract_strided_slice %163 {offsets = [0, 32], sizes = [16, 16], strides = [1, 1]} : vector<16x48xf32> to vector<16x16xf32>
    %169 = vector.shape_cast %168 : vector<16x16xf32> to vector<2x8x16xf32>
    %170 = vector.extract_strided_slice %165 {offsets = [0, 0, 0], sizes = [2, 8, 8], strides = [1, 1, 1]} : vector<2x8x16xf32> to vector<2x8x8xf32>
    %171 = arith.truncf %170 : vector<2x8x8xf32> to vector<2x8x8xbf16>
    %172 = vector.extract_strided_slice %167 {offsets = [0, 0, 0], sizes = [2, 8, 8], strides = [1, 1, 1]} : vector<2x8x16xf32> to vector<2x8x8xf32>
    %173 = arith.truncf %172 : vector<2x8x8xf32> to vector<2x8x8xbf16>
    %174 = vector.extract_strided_slice %169 {offsets = [0, 0, 0], sizes = [2, 8, 8], strides = [1, 1, 1]} : vector<2x8x16xf32> to vector<2x8x8xf32>
    %175 = arith.truncf %174 : vector<2x8x8xf32> to vector<2x8x8xbf16>
    "tpu.trace_start"() <{level = 10 : i32, message = "bqd,bkd->bqk"}> : () -> ()
    %cst_79 = arith.constant dense<0.000000e+00> : vector<2x8x8xf32>
    %176 = tpu.matmul %171, %173, %cst_79 {dimension_numbers = #tpu.dot_dimension_numbers<[2], [2], [1], [1], [0, 0, 0, 1, 1, 1], [0], [0]>} : vector<2x8x8xbf16>, vector<2x8x8xbf16>, vector<2x8x8xf32> -> vector<2x8x8xf32>
    %cst_80 = arith.constant 0.000000e+00 : f32
    "tpu.trace_stop"() : () -> ()
    %177 = vector.broadcast %cst_80 : f32 to vector<2x1x8xf32>
    %178 = arith.cmpf ogt, %1, %177 : vector<2x1x8xf32>
    %cst_81 = arith.constant -1.000000e+09 : f32
    %179 = vector.shape_cast %178 : vector<2x1x8xi1> to vector<2x1x8xi1>
    %180 = vector.broadcast %179 : vector<2x1x8xi1> to vector<2x8x8xi1>
    %181 = vector.broadcast %cst_81 : f32 to vector<2x8x8xf32>
    %182 = arith.select %180, %176, %181 : vector<2x8x8xi1>, vector<2x8x8xf32>
    %cst_82 = arith.constant dense<0xFF800000> : vector<2x8xf32>
    %183 = vector.multi_reduction <maximumf>, %182, %cst_82 [2] : vector<2x8x8xf32> to vector<2x8xf32>
    %184 = vector.shape_cast %183 : vector<2x8xf32> to vector<2x8x1xf32>
    %185 = vector.broadcast %184 : vector<2x8x1xf32> to vector<2x8x8xf32>
    %186 = arith.subf %182, %185 : vector<2x8x8xf32>
    %187 = math.exp %186 : vector<2x8x8xf32>
    %cst_83 = arith.constant dense<0.000000e+00> : vector<2x8xf32>
    %188 = vector.multi_reduction <add>, %187, %cst_83 [2] : vector<2x8x8xf32> to vector<2x8xf32>
    %189 = vector.shape_cast %188 : vector<2x8xf32> to vector<2x8x1xf32>
    %190 = tpu.reciprocal %189 {approx = true} : vector<2x8x1xf32> -> vector<2x8x1xf32>
    %191 = vector.broadcast %190 : vector<2x8x1xf32> to vector<2x8x8xf32>
    %192 = arith.mulf %187, %191 : vector<2x8x8xf32>
    %193 = arith.truncf %192 : vector<2x8x8xf32> to vector<2x8x8xbf16>
    "tpu.trace_start"() <{level = 10 : i32, message = "bqk,bkd->bqd"}> : () -> ()
    %cst_84 = arith.constant dense<0.000000e+00> : vector<2x8x8xf32>
    %194 = tpu.matmul %193, %175, %cst_84 {dimension_numbers = #tpu.dot_dimension_numbers<[2], [1], [1], [2], [0, 0, 0, 1, 1, 2], [0], [0]>} : vector<2x8x8xbf16>, vector<2x8x8xbf16>, vector<2x8x8xf32> -> vector<2x8x8xf32>
    "tpu.trace_stop"() : () -> ()
    %195 = vector.shape_cast %194 : vector<2x8x8xf32> to vector<16x8xf32>
    %c0_85 = arith.constant 0 : index
    %c0_86 = arith.constant 0 : index
    %196 = vector.load %arg16[%c0_85, %c0_86] : memref<16x16xf32, #tpu.memory_space<vmem>>, vector<16x8xf32>
    tpu.vector_store %arg16[%c0_85, %c0_86], %195 {strides = array<i32>} : memref<16x16xf32, #tpu.memory_space<vmem>>, vector<16x8xf32>,
    %197 = vector.extract_strided_slice %165 {offsets = [0, 0, 8], sizes = [2, 8, 8], strides = [1, 1, 1]} : vector<2x8x16xf32> to vector<2x8x8xf32>
    %198 = arith.truncf %197 : vector<2x8x8xf32> to vector<2x8x8xbf16>
    %199 = vector.extract_strided_slice %167 {offsets = [0, 0, 8], sizes = [2, 8, 8], strides = [1, 1, 1]} : vector<2x8x16xf32> to vector<2x8x8xf32>
    %200 = arith.truncf %199 : vector<2x8x8xf32> to vector<2x8x8xbf16>
    %201 = vector.extract_strided_slice %169 {offsets = [0, 0, 8], sizes = [2, 8, 8], strides = [1, 1, 1]} : vector<2x8x16xf32> to vector<2x8x8xf32>
    %202 = arith.truncf %201 : vector<2x8x8xf32> to vector<2x8x8xbf16>
    "tpu.trace_start"() <{level = 10 : i32, message = "bqd,bkd->bqk"}> : () -> ()
    %cst_87 = arith.constant dense<0.000000e+00> : vector<2x8x8xf32>
    %203 = tpu.matmul %198, %200, %cst_87 {dimension_numbers = #tpu.dot_dimension_numbers<[2], [2], [1], [1], [0, 0, 0, 1, 1, 1], [0], [0]>} : vector<2x8x8xbf16>, vector<2x8x8xbf16>, vector<2x8x8xf32> -> vector<2x8x8xf32>
    %cst_88 = arith.constant 0.000000e+00 : f32
    "tpu.trace_stop"() : () -> ()
    %204 = vector.broadcast %cst_88 : f32 to vector<2x1x8xf32>
    %205 = arith.cmpf ogt, %1, %204 : vector<2x1x8xf32>
    %cst_89 = arith.constant -1.000000e+09 : f32
    %206 = vector.shape_cast %205 : vector<2x1x8xi1> to vector<2x1x8xi1>
    %207 = vector.broadcast %206 : vector<2x1x8xi1> to vector<2x8x8xi1>
    %208 = vector.broadcast %cst_89 : f32 to vector<2x8x8xf32>
    %209 = arith.select %207, %203, %208 : vector<2x8x8xi1>, vector<2x8x8xf32>
    %cst_90 = arith.constant dense<0xFF800000> : vector<2x8xf32>
    %210 = vector.multi_reduction <maximumf>, %209, %cst_90 [2] : vector<2x8x8xf32> to vector<2x8xf32>
    %211 = vector.shape_cast %210 : vector<2x8xf32> to vector<2x8x1xf32>
    %212 = vector.broadcast %211 : vector<2x8x1xf32> to vector<2x8x8xf32>
    %213 = arith.subf %209, %212 : vector<2x8x8xf32>
    %214 = math.exp %213 : vector<2x8x8xf32>
    %cst_91 = arith.constant dense<0.000000e+00> : vector<2x8xf32>
    %215 = vector.multi_reduction <add>, %214, %cst_91 [2] : vector<2x8x8xf32> to vector<2x8xf32>
    %216 = vector.shape_cast %215 : vector<2x8xf32> to vector<2x8x1xf32>
    %217 = tpu.reciprocal %216 {approx = true} : vector<2x8x1xf32> -> vector<2x8x1xf32>
    %218 = vector.broadcast %217 : vector<2x8x1xf32> to vector<2x8x8xf32>
    %219 = arith.mulf %214, %218 : vector<2x8x8xf32>
    %220 = arith.truncf %219 : vector<2x8x8xf32> to vector<2x8x8xbf16>
    "tpu.trace_start"() <{level = 10 : i32, message = "bqk,bkd->bqd"}> : () -> ()
    %cst_92 = arith.constant dense<0.000000e+00> : vector<2x8x8xf32>
    %221 = tpu.matmul %220, %202, %cst_92 {dimension_numbers = #tpu.dot_dimension_numbers<[2], [1], [1], [2], [0, 0, 0, 1, 1, 2], [0], [0]>} : vector<2x8x8xbf16>, vector<2x8x8xbf16>, vector<2x8x8xf32> -> vector<2x8x8xf32>
    "tpu.trace_stop"() : () -> ()
    %222 = vector.shape_cast %221 : vector<2x8x8xf32> to vector<16x8xf32>
    %c0_93 = arith.constant 0 : index
    %c8_94 = arith.constant 8 : index
    %223 = vector.load %arg16[%c0_93, %c8_94] : memref<16x16xf32, #tpu.memory_space<vmem>>, vector<16x8xf32>
    tpu.vector_store %arg16[%c0_93, %c8_94], %222 {strides = array<i32>} : memref<16x16xf32, #tpu.memory_space<vmem>>, vector<16x8xf32>,
    %c0_95 = arith.constant 0 : index
    %c0_96 = arith.constant 0 : index
    %224 = vector.load %arg16[%c0_95, %c0_96] : memref<16x16xf32, #tpu.memory_space<vmem>>, vector<16x16xf32>
    %225 = arith.truncf %224 : vector<16x16xf32> to vector<16x16xbf16>
    %c1_97 = arith.constant 1 : index
    %c0_98 = arith.constant 0 : index
    %c0_99 = arith.constant 0 : index
    %226 = vector.load %arg5[%c1_97, %c0_98, %c0_99] : memref<2x16x32xbf16, #tpu.memory_space<vmem>>, vector<1x16x32xbf16>
    %227 = vector.shape_cast %226 : vector<1x16x32xbf16> to vector<16x32xbf16>
    %cst_100 = arith.constant dense<0.000000e+00> : vector<16x32xf32>
    %228 = tpu.matmul %225, %227, %cst_100 {dimension_numbers = #tpu.dot_dimension_numbers<[1], [0], [0], [1], [0, 0, 1, 1], [], []>} : vector<16x16xbf16>, vector<16x32xbf16>, vector<16x32xf32> -> vector<16x32xf32>
    %c1_101 = arith.constant 1 : index
    %c0_102 = arith.constant 0 : index
    %c0_103 = arith.constant 0 : index
    %229 = vector.load %arg6[%c1_101, %c0_102, %c0_103] : memref<2x1x32xf32, #tpu.memory_space<vmem>>, vector<1x1x32xf32>
    %230 = vector.shape_cast %229 : vector<1x1x32xf32> to vector<1x32xf32>
    %231 = vector.broadcast %230 : vector<1x32xf32> to vector<16x32xf32>
    %232 = arith.addf %228, %231 : vector<16x32xf32>
    %233 = arith.addf %232, %155 : vector<16x32xf32>
    %c1_104 = arith.constant 1 : index
    %c0_105 = arith.constant 0 : index
    %c0_106 = arith.constant 0 : index
    %234 = vector.load %arg7[%c1_104, %c0_105, %c0_106] : memref<2x1x32xf32, #tpu.memory_space<vmem>>, vector<1x1x32xf32>
    %235 = vector.shape_cast %234 : vector<1x1x32xf32> to vector<1x32xf32>
    %c1_107 = arith.constant 1 : index
    %c0_108 = arith.constant 0 : index
    %c0_109 = arith.constant 0 : index
    %236 = vector.load %arg8[%c1_107, %c0_108, %c0_109] : memref<2x1x32xf32, #tpu.memory_space<vmem>>, vector<1x1x32xf32>
    %237 = vector.shape_cast %236 : vector<1x1x32xf32> to vector<1x32xf32>
    %cst_110 = arith.constant dense<0.000000e+00> : vector<16xf32>
    %238 = vector.multi_reduction <add>, %233, %cst_110 [1] : vector<16x32xf32> to vector<16xf32>
    %239 = vector.shape_cast %238 : vector<16xf32> to vector<16x1xf32>
    %cst_111 = arith.constant 3.200000e+01 : f32
    %240 = vector.broadcast %cst_111 : f32 to vector<16x1xf32>
    %241 = arith.divf %239, %240 : vector<16x1xf32>
    %242 = arith.mulf %233, %233 : vector<16x32xf32>
    %cst_112 = arith.constant dense<0.000000e+00> : vector<16xf32>
    %243 = vector.multi_reduction <add>, %242, %cst_112 [1] : vector<16x32xf32> to vector<16xf32>
    %244 = vector.shape_cast %243 : vector<16xf32> to vector<16x1xf32>
    %cst_113 = arith.constant 3.200000e+01 : f32
    %245 = vector.broadcast %cst_113 : f32 to vector<16x1xf32>
    %246 = arith.divf %244, %245 : vector<16x1xf32>
    %247 = arith.mulf %241, %241 : vector<16x1xf32>
    %248 = arith.subf %246, %247 : vector<16x1xf32>
    %cst_114 = arith.constant 9.99999974E-6 : f32
    %249 = vector.broadcast %cst_114 : f32 to vector<16x1xf32>
    %250 = arith.addf %248, %249 : vector<16x1xf32>
    %251 = math.rsqrt %250 : vector<16x1xf32>
    %252 = vector.broadcast %241 : vector<16x1xf32> to vector<16x32xf32>
    %253 = arith.subf %233, %252 : vector<16x32xf32>
    %254 = vector.broadcast %251 : vector<16x1xf32> to vector<16x32xf32>
    %255 = arith.mulf %253, %254 : vector<16x32xf32>
    %256 = vector.broadcast %235 : vector<1x32xf32> to vector<16x32xf32>
    %257 = arith.mulf %255, %256 : vector<16x32xf32>
    %258 = vector.broadcast %237 : vector<1x32xf32> to vector<16x32xf32>
    %259 = arith.addf %257, %258 : vector<16x32xf32>
    %260 = vector.broadcast %2 : vector<16x1xf32> to vector<16x32xf32>
    %261 = arith.mulf %259, %260 : vector<16x32xf32>
    %262 = arith.truncf %261 : vector<16x32xf32> to vector<16x32xbf16>
    %c1_115 = arith.constant 1 : index
    %c0_116 = arith.constant 0 : index
    %c0_117 = arith.constant 0 : index
    %263 = vector.load %arg9[%c1_115, %c0_116, %c0_117] : memref<2x32x64xbf16, #tpu.memory_space<vmem>>, vector<1x32x64xbf16>
    %264 = vector.shape_cast %263 : vector<1x32x64xbf16> to vector<32x64xbf16>
    %cst_118 = arith.constant dense<0.000000e+00> : vector<16x64xf32>
    %265 = tpu.matmul %262, %264, %cst_118 {dimension_numbers = #tpu.dot_dimension_numbers<[1], [0], [0], [1], [0, 0, 1, 1], [], []>} : vector<16x32xbf16>, vector<32x64xbf16>, vector<16x64xf32> -> vector<16x64xf32>
    %c1_119 = arith.constant 1 : index
    %c0_120 = arith.constant 0 : index
    %c0_121 = arith.constant 0 : index
    %266 = vector.load %arg10[%c1_119, %c0_120, %c0_121] : memref<2x1x64xf32, #tpu.memory_space<vmem>>, vector<1x1x64xf32>
    %267 = vector.shape_cast %266 : vector<1x1x64xf32> to vector<1x64xf32>
    %268 = vector.broadcast %267 : vector<1x64xf32> to vector<16x64xf32>
    %269 = arith.addf %265, %268 : vector<16x64xf32>
    %cst_122 = arith.constant 0.000000e+00 : f32
    %270 = vector.broadcast %cst_122 : f32 to vector<16x64xf32>
    %271 = arith.maximumf %269, %270 : vector<16x64xf32>
    %272 = arith.truncf %271 : vector<16x64xf32> to vector<16x64xbf16>
    %c1_123 = arith.constant 1 : index
    %c0_124 = arith.constant 0 : index
    %c0_125 = arith.constant 0 : index
    %273 = vector.load %arg11[%c1_123, %c0_124, %c0_125] : memref<2x64x32xbf16, #tpu.memory_space<vmem>>, vector<1x64x32xbf16>
    %274 = vector.shape_cast %273 : vector<1x64x32xbf16> to vector<64x32xbf16>
    %cst_126 = arith.constant dense<0.000000e+00> : vector<16x32xf32>
    %275 = tpu.matmul %272, %274, %cst_126 {dimension_numbers = #tpu.dot_dimension_numbers<[1], [0], [0], [1], [0, 0, 1, 1], [], []>} : vector<16x64xbf16>, vector<64x32xbf16>, vector<16x32xf32> -> vector<16x32xf32>
    %c1_127 = arith.constant 1 : index
    %c0_128 = arith.constant 0 : index
    %c0_129 = arith.constant 0 : index
    %276 = vector.load %arg12[%c1_127, %c0_128, %c0_129] : memref<2x1x32xf32, #tpu.memory_space<vmem>>, vector<1x1x32xf32>
    %277 = vector.shape_cast %276 : vector<1x1x32xf32> to vector<1x32xf32>
    %278 = vector.broadcast %277 : vector<1x32xf32> to vector<16x32xf32>
    %279 = arith.addf %275, %278 : vector<16x32xf32>
    %280 = arith.addf %279, %261 : vector<16x32xf32>
    %c1_130 = arith.constant 1 : index
    %c0_131 = arith.constant 0 : index
    %c0_132 = arith.constant 0 : index
    %281 = vector.load %arg13[%c1_130, %c0_131, %c0_132] : memref<2x1x32xf32, #tpu.memory_space<vmem>>, vector<1x1x32xf32>
    %282 = vector.shape_cast %281 : vector<1x1x32xf32> to vector<1x32xf32>
    %c1_133 = arith.constant 1 : index
    %c0_134 = arith.constant 0 : index
    %c0_135 = arith.constant 0 : index
    %283 = vector.load %arg14[%c1_133, %c0_134, %c0_135] : memref<2x1x32xf32, #tpu.memory_space<vmem>>, vector<1x1x32xf32>
    %284 = vector.shape_cast %283 : vector<1x1x32xf32> to vector<1x32xf32>
    %cst_136 = arith.constant dense<0.000000e+00> : vector<16xf32>
    %285 = vector.multi_reduction <add>, %280, %cst_136 [1] : vector<16x32xf32> to vector<16xf32>
    %286 = vector.shape_cast %285 : vector<16xf32> to vector<16x1xf32>
    %cst_137 = arith.constant 3.200000e+01 : f32
    %287 = vector.broadcast %cst_137 : f32 to vector<16x1xf32>
    %288 = arith.divf %286, %287 : vector<16x1xf32>
    %289 = arith.mulf %280, %280 : vector<16x32xf32>
    %cst_138 = arith.constant dense<0.000000e+00> : vector<16xf32>
    %290 = vector.multi_reduction <add>, %289, %cst_138 [1] : vector<16x32xf32> to vector<16xf32>
    %291 = vector.shape_cast %290 : vector<16xf32> to vector<16x1xf32>
    %cst_139 = arith.constant 3.200000e+01 : f32
    %292 = vector.broadcast %cst_139 : f32 to vector<16x1xf32>
    %293 = arith.divf %291, %292 : vector<16x1xf32>
    %294 = arith.mulf %288, %288 : vector<16x1xf32>
    %295 = arith.subf %293, %294 : vector<16x1xf32>
    %cst_140 = arith.constant 9.99999974E-6 : f32
    %296 = vector.broadcast %cst_140 : f32 to vector<16x1xf32>
    %297 = arith.addf %295, %296 : vector<16x1xf32>
    %298 = math.rsqrt %297 : vector<16x1xf32>
    %299 = vector.broadcast %288 : vector<16x1xf32> to vector<16x32xf32>
    %300 = arith.subf %280, %299 : vector<16x32xf32>
    %301 = vector.broadcast %298 : vector<16x1xf32> to vector<16x32xf32>
    %302 = arith.mulf %300, %301 : vector<16x32xf32>
    %303 = vector.broadcast %282 : vector<1x32xf32> to vector<16x32xf32>
    %304 = arith.mulf %302, %303 : vector<16x32xf32>
    %305 = vector.broadcast %284 : vector<1x32xf32> to vector<16x32xf32>
    %306 = arith.addf %304, %305 : vector<16x32xf32>
    %307 = vector.broadcast %2 : vector<16x1xf32> to vector<16x32xf32>
    %308 = arith.mulf %306, %307 : vector<16x32xf32>
    %309 = vector.extract_strided_slice %308 {offsets = [0, 0], sizes = [8, 32], strides = [1, 1]} : vector<16x32xf32> to vector<8x32xf32>
    %cst_141 = arith.constant dense<0xFF800000> : vector<32xf32>
    %310 = vector.multi_reduction <maximumf>, %309, %cst_141 [0] : vector<8x32xf32> to vector<32xf32>
    %311 = vector.shape_cast %310 : vector<32xf32> to vector<1x32xf32>
    %c0_142 = arith.constant 0 : index
    %c0_143 = arith.constant 0 : index
    %312 = vector.load %arg15[%c0_142, %c0_143] : memref<2x32xf32, #tpu.memory_space<vmem>>, vector<1x32xf32>
    tpu.vector_store %arg15[%c0_142, %c0_143], %311 {strides = array<i32>} : memref<2x32xf32, #tpu.memory_space<vmem>>, vector<1x32xf32>,
    %313 = vector.extract_strided_slice %308 {offsets = [8, 0], sizes = [8, 32], strides = [1, 1]} : vector<16x32xf32> to vector<8x32xf32>
    %cst_144 = arith.constant dense<0xFF800000> : vector<32xf32>
    %314 = vector.multi_reduction <maximumf>, %313, %cst_144 [0] : vector<8x32xf32> to vector<32xf32>
    %315 = vector.shape_cast %314 : vector<32xf32> to vector<1x32xf32>
    %c1_145 = arith.constant 1 : index
    %c0_146 = arith.constant 0 : index
    %316 = vector.load %arg15[%c1_145, %c0_146] : memref<2x32xf32, #tpu.memory_space<vmem>>, vector<1x32xf32>
    tpu.vector_store %arg15[%c1_145, %c0_146], %315 {strides = array<i32>} : memref<2x32xf32, #tpu.memory_space<vmem>>, vector<1x32xf32>,
    return
  }
}

</mosaic_0001>

<llo_original>
// kernel: transfo_enc_forward.1
$region0: #{transfo_enc_forward.1}
  #allocation0 [shape = 'u32[]', space=smem, size = 0x4, offset = 0x4, fixed_abs, tag = 'smem constant byte address 0x4 - core index']
  #allocation1 [shape = 'u32[144,128]{1,0:T(1,128)}', space=vmem, size = 0x12000, scoped, tag = 'internal scratch']
  #allocation2 [shape = 'f32[16,16]{1,0:T(8,128)}', space=vmem, size = 0x2000, scoped, tag = 'scratch operand']
  %s0 = inlined_call_operand.vmem [shape: f32[16,32], index: 0, kind: input, shape index: {}]
  %s1 = inlined_call_operand.vmem [shape: f32[2,1,8], index: 1, kind: input, shape index: {}]
  %s2 = inlined_call_operand.vmem [shape: f32[16,1], index: 2, kind: input, shape index: {}]
  %s3 = inlined_call_operand.vmem [shape: bf16[2,32,48], index: 3, kind: input, shape index: {}]
  %s4 = inlined_call_operand.vmem [shape: f32[2,1,48], index: 4, kind: input, shape index: {}]
  %s5 = inlined_call_operand.vmem [shape: bf16[2,16,32], index: 5, kind: input, shape index: {}]
  %s6 = inlined_call_operand.vmem [shape: f32[2,1,32], index: 6, kind: input, shape index: {}]
  %s7 = inlined_call_operand.vmem [shape: f32[2,1,32], index: 7, kind: input, shape index: {}]
  %s8 = inlined_call_operand.vmem [shape: f32[2,1,32], index: 8, kind: input, shape index: {}]
  %s9 = inlined_call_operand.vmem [shape: bf16[2,32,64], index: 9, kind: input, shape index: {}]
  %s10 = inlined_call_operand.vmem [shape: f32[2,1,64], index: 10, kind: input, shape index: {}]
  %s11 = inlined_call_operand.vmem [shape: bf16[2,64,32], index: 11, kind: input, shape index: {}]
  %s12 = inlined_call_operand.vmem [shape: f32[2,1,32], index: 12, kind: input, shape index: {}]
  %s13 = inlined_call_operand.vmem [shape: f32[2,1,32], index: 13, kind: input, shape index: {}]
  %s14 = inlined_call_operand.vmem [shape: f32[2,1,32], index: 14, kind: input, shape index: {}]
  %s15 = inlined_call_operand.hbm [shape: f32[2,32], index: 15, kind: output, shape index: {}]
  %s16 = sld [smem:[#allocation0]]
  $region70: #{transfo_enc_forward.1} parent=0
    _
  %s18 = ssub.s32 1, %s16
  %s19 = scalar_select 0, %s18, %s16
  $region1: #{transfo_enc_forward.1} parent=0
    #allocation3 [shape = 'u8[1024]{0}', space=vmem, size = 0x400, scoped, tag = 'output window, operand 0, single buffered']
    #allocation4 [shape = 's32[1]{0}', space=sflag, size = 0x4, scoped, tag = 'scoped memory for transfo_enc_forward.1']
    %20 = vsyncpa [#allocation4], 0
    // Predicated region
    $region2: #{transfo_enc_forward.1} parent=1 // pred_check
      _
    $region3: #{transfo_enc_forward.1} parent=1 // pred_check_branch
      %22 = sbr.rel (0) target = $region5
    $region4: #{transfo_enc_forward.1} parent=1 // pred_region
      _
    $region5: #{transfo_enc_forward.1} parent=1 // pred_fallthru
      _
    // Predicated region
    $region6: #{transfo_enc_forward.1} parent=1 // pred_check
      _
    $region7: #{transfo_enc_forward.1} parent=1 // pred_check_branch
      %24 = sbr.rel (0) target = $region9
    $region8: #{transfo_enc_forward.1} parent=1 // pred_region
      _
    $region9: #{transfo_enc_forward.1} parent=1 // pred_fallthru
      _
    // Predicated region
    $region10: #{transfo_enc_forward.1} parent=1 // pred_check
      _
    $region11: #{transfo_enc_forward.1} parent=1 // pred_check_branch
      %26 = sbr.rel (0) target = $region13
    $region12: #{transfo_enc_forward.1} parent=1 // pred_region
      _
    $region13: #{transfo_enc_forward.1} parent=1 // pred_fallthru
      _
    // Predicated region
    $region14: #{transfo_enc_forward.1} parent=1 // pred_check
      _
    $region15: #{transfo_enc_forward.1} parent=1 // pred_check_branch
      %28 = sbr.rel (0) target = $region17
    $region16: #{transfo_enc_forward.1} parent=1 // pred_region
      _
    $region17: #{transfo_enc_forward.1} parent=1 // pred_fallthru
      _
    // Predicated region
    $region18: #{transfo_enc_forward.1} parent=1 // pred_check
      _
    $region19: #{transfo_enc_forward.1} parent=1 // pred_check_branch
      %30 = sbr.rel (0) target = $region21
    $region20: #{transfo_enc_forward.1} parent=1 // pred_region
      _
    $region21: #{transfo_enc_forward.1} parent=1 // pred_fallthru
      _
    // Predicated region
    $region22: #{transfo_enc_forward.1} parent=1 // pred_check
      _
    $region23: #{transfo_enc_forward.1} parent=1 // pred_check_branch
      %32 = sbr.rel (0) target = $region25
    $region24: #{transfo_enc_forward.1} parent=1 // pred_region
      _
    $region25: #{transfo_enc_forward.1} parent=1 // pred_fallthru
      _
    // Predicated region
    $region26: #{transfo_enc_forward.1} parent=1 // pred_check
      _
    $region27: #{transfo_enc_forward.1} parent=1 // pred_check_branch
      %34 = sbr.rel (0) target = $region29
    $region28: #{transfo_enc_forward.1} parent=1 // pred_region
      _
    $region29: #{transfo_enc_forward.1} parent=1 // pred_fallthru
      _
    // Predicated region
    $region30: #{transfo_enc_forward.1} parent=1 // pred_check
      _
    $region31: #{transfo_enc_forward.1} parent=1 // pred_check_branch
      %36 = sbr.rel (0) target = $region33
    $region32: #{transfo_enc_forward.1} parent=1 // pred_region
      _
    $region33: #{transfo_enc_forward.1} parent=1 // pred_fallthru
      _
    // Predicated region
    $region34: #{transfo_enc_forward.1} parent=1 // pred_check
      _
    $region35: #{transfo_enc_forward.1} parent=1 // pred_check_branch
      %38 = sbr.rel (0) target = $region37
    $region36: #{transfo_enc_forward.1} parent=1 // pred_region
      _
    $region37: #{transfo_enc_forward.1} parent=1 // pred_fallthru
      _
    // Predicated region
    $region38: #{transfo_enc_forward.1} parent=1 // pred_check
      _
    $region39: #{transfo_enc_forward.1} parent=1 // pred_check_branch
      %40 = sbr.rel (0) target = $region41
    $region40: #{transfo_enc_forward.1} parent=1 // pred_region
      _
    $region41: #{transfo_enc_forward.1} parent=1 // pred_fallthru
      _
    // Predicated region
    $region42: #{transfo_enc_forward.1} parent=1 // pred_check
      _
    $region43: #{transfo_enc_forward.1} parent=1 // pred_check_branch
      %42 = sbr.rel (0) target = $region45
    $region44: #{transfo_enc_forward.1} parent=1 // pred_region
      _
    $region45: #{transfo_enc_forward.1} parent=1 // pred_fallthru
      _
    // Predicated region
    $region46: #{transfo_enc_forward.1} parent=1 // pred_check
      _
    $region47: #{transfo_enc_forward.1} parent=1 // pred_check_branch
      %44 = sbr.rel (0) target = $region49
    $region48: #{transfo_enc_forward.1} parent=1 // pred_region
      _
    $region49: #{transfo_enc_forward.1} parent=1 // pred_fallthru
      _
    // Predicated region
    $region50: #{transfo_enc_forward.1} parent=1 // pred_check
      _
    $region51: #{transfo_enc_forward.1} parent=1 // pred_check_branch
      %46 = sbr.rel (0) target = $region53
    $region52: #{transfo_enc_forward.1} parent=1 // pred_region
      _
    $region53: #{transfo_enc_forward.1} parent=1 // pred_fallthru
      _
    // Predicated region
    $region54: #{transfo_enc_forward.1} parent=1 // pred_check
      _
    $region55: #{transfo_enc_forward.1} parent=1 // pred_check_branch
      %48 = sbr.rel (0) target = $region57
    $region56: #{transfo_enc_forward.1} parent=1 // pred_region
      _
    $region57: #{transfo_enc_forward.1} parent=1 // pred_fallthru
      _
    // Predicated region
    $region58: #{transfo_enc_forward.1} parent=1 // pred_check
      _
    $region59: #{transfo_enc_forward.1} parent=1 // pred_check_branch
      %50 = sbr.rel (0) target = $region61
    $region60: #{transfo_enc_forward.1} parent=1 // pred_region
      _
    $region61: #{transfo_enc_forward.1} parent=1 // pred_fallthru
      _
    %v52 = vld [vmem:[%s0] sm:$0xff]
    %v53 = vld [vmem:[%s0 + $0x8] sm:$0xff]
    %v54 = vld [vmem:[%s1] sm:$0x1]
    %v55 = vld [vmem:[%s1 + $0x1] sm:$0x1]
    %v56 = vld [vmem:[%s2] sm:$0xff]
    %v57 = vld [vmem:[%s2 + $0x8] sm:$0xff]
    %v58 = vpack.c.bf16 %v53, %v52
    %v59 = vld [vmem:[%s3] sm:$0xf]
    %v60 = vld [vmem:[%s3 + $0x4] sm:$0xf]
    %v61 = vld [vmem:[%s3 + $0x8] sm:$0xf]
    %v62 = vld [vmem:[%s3 + $0xc] sm:$0xf]
    %v63 = vld [vmem:[%s4] sm:$0x1]
    %v65 = vlaneseq
    %v66 = vshrl.u32 %v65, 7
    %v67 = vsub.s32 0, %v66
    %v68 = vrot.slane %v63, %v67
    %v74 = vunpack.c.l.b16 %v59
    %v75 = vunpack.c.l.b16 %v60
    %v76 = vunpack.c.l.b16 %v61
    %v77 = vunpack.c.l.b16 %v62
    %v78 = vpack.c.b16 %v75, %v74
    %v79 = vpack.c.b16 %v77, %v76
    %vm82 = vcmask 261120
    %v84 = vsel %vm82, %v58, 0
    %86 = vmatprep.subr.bf16.mxu0 0
    %87 = vmatpush1.bf16.msra.mxu0 0
    %88 = vmatprep.subr.bf16.mxu0 0
    %89 = vmatpush1.bf16.msra.mxu0 0
    %90 = vmatprep.subr.bf16.mxu0 0
    %91 = vmatpush1.bf16.msra.mxu0 0
    %92 = vmatprep.subr.bf16.mxu0 0
    %93 = vmatpush1.bf16.msra.mxu0 0
    %94 = vmatprep.subr.bf16.mxu0 0
    %95 = vmatpush1.bf16.msra.mxu0 0
    %96 = vmatprep.subr.bf16.mxu0 0
    %97 = vmatpush1.bf16.msra.mxu0 0
    %98 = vmatprep.subr.bf16.mxu0 0
    %99 = vmatpush1.bf16.msra.mxu0 %v79
    %100 = vmatprep.subr.bf16.mxu0 0
    %101 = vmatpush1.bf16.msra.mxu0 %v78
    %102 = vmatprep.subr.bf16.mxu0 0
    %103 = vmatpush2.bf16.msra.mxu0 0
    %104 = vmatprep.subr.bf16.mxu0 0
    %105 = vmatpush2.bf16.msra.mxu0 0
    %106 = vmatprep.subr.bf16.mxu0 0
    %107 = vmatpush2.bf16.msra.mxu0 0
    %108 = vmatprep.subr.bf16.mxu0 0
    %109 = vmatpush2.bf16.msra.mxu0 0
    %110 = vmatprep.subr.bf16.mxu0 0
    %111 = vmatpush2.bf16.msra.mxu0 0
    %112 = vmatprep.subr.bf16.mxu0 0
    %113 = vmatpush2.bf16.msra.mxu0 0
    %114 = vmatprep.subr.bf16.mxu0 0
    %115 = vmatpush2.bf16.msra.mxu0 0
    %116 = vmatprep.subr.bf16.mxu0 0
    %117 = vmatpush2.bf16.msra.mxu0 0
    %118 = vmatprep.mubr.bf16.mxu0 0
    %119 = vmatmul.mubr.bf16.gmra.mxu0 %v84
    %v120 = vpop.f32.mrf.mxu0
    %v121 = vadd.f32 %v68, %v120
    %v122 = vpop.f32.mrf.mxu0
    %v123 = vpop.f32.mrf.mxu0
    %v124 = vadd.f32 %v68, %v123
    %v125 = vpop.f32.mrf.mxu0
    %126 = vdwg.mxu0
    %v127 = vpack.c.bf16 %v121, %v121
    %v128 = vpack.c.bf16 %v124, %v124
    %130 = vrot.lane.b32.xlu0 %v127, 112
    %v131 = vpop.permute.xlu0 %130
    %vm132 = vcmask 64512
    %v134 = vsel %vm132, %v127, 0
    %v137 = vsel %vm132, %v131, 0
    %139 = vmatprep.subr.bf16.mxu0 0
    %140 = vmatpush1.bf16.xpose.msra.mxu0 0
    %141 = vmatprep.subr.bf16.mxu0 0
    %142 = vmatpush1.bf16.xpose.msra.mxu0 0
    %143 = vmatprep.subr.bf16.mxu0 0
    %144 = vmatpush1.bf16.xpose.msra.mxu0 0
    %145 = vmatprep.subr.bf16.mxu0 0
    %146 = vmatpush1.bf16.xpose.msra.mxu0 0
    %147 = vmatprep.subr.bf16.mxu0 0
    %148 = vmatpush1.bf16.xpose.msra.mxu0 0
    %149 = vmatprep.subr.bf16.mxu0 0
    %150 = vmatpush1.bf16.xpose.msra.mxu0 0
    %151 = vmatprep.subr.bf16.mxu0 0
    %152 = vmatpush1.bf16.xpose.msra.mxu0 0
    %153 = vmatprep.subr.bf16.mxu0 0
    %154 = vmatpush1.bf16.xpose.msra.mxu0 %v137
    %155 = vmatprep.subr.bf16.mxu0 0
    %156 = vmatpush2.bf16.xpose.msra.mxu0 0
    %157 = vmatprep.subr.bf16.mxu0 0
    %158 = vmatpush2.bf16.xpose.msra.mxu0 0
    %159 = vmatprep.subr.bf16.mxu0 0
    %160 = vmatpush2.bf16.xpose.msra.mxu0 0
    %161 = vmatprep.subr.bf16.mxu0 0
    %162 = vmatpush2.bf16.xpose.msra.mxu0 0
    %163 = vmatprep.subr.bf16.mxu0 0
    %164 = vmatpush2.bf16.xpose.msra.mxu0 0
    %165 = vmatprep.subr.bf16.mxu0 0
    %166 = vmatpush2.bf16.xpose.msra.mxu0 0
    %167 = vmatprep.subr.bf16.mxu0 0
    %168 = vmatpush2.bf16.xpose.msra.mxu0 0
    %169 = vmatprep.subr.bf16.mxu0 0
    %170 = vmatpush2.bf16.xpose.msra.mxu0 0
    %171 = vmatprep.mubr.bf16.mxu0 0
    %172 = vmatmul.mubr.bf16.gmra.mxu0 %v134
    %v173 = vpop.f32.mrf.mxu0
    %v174 = vadd.f32 0.0, %v173
    %v175 = vpop.f32.mrf.mxu0
    %v176 = vpop.f32.mrf.mxu0
    %v177 = vpop.f32.mrf.mxu0
    %178 = vdwg.mxu0
    %180 = vrot.lane.b32.xlu0 %v128, 112
    %v181 = vpop.permute.xlu0 %180
    %v183 = vsel %vm132, %v128, 0
    %v186 = vsel %vm132, %v181, 0
    %188 = vmatprep.subr.bf16.mxu0 0
    %189 = vmatpush1.bf16.xpose.msra.mxu0 0
    %190 = vmatprep.subr.bf16.mxu0 0
    %191 = vmatpush1.bf16.xpose.msra.mxu0 0
    %192 = vmatprep.subr.bf16.mxu0 0
    %193 = vmatpush1.bf16.xpose.msra.mxu0 0
    %194 = vmatprep.subr.bf16.mxu0 0
    %195 = vmatpush1.bf16.xpose.msra.mxu0 0
    %196 = vmatprep.subr.bf16.mxu0 0
    %197 = vmatpush1.bf16.xpose.msra.mxu0 0
    %198 = vmatprep.subr.bf16.mxu0 0
    %199 = vmatpush1.bf16.xpose.msra.mxu0 0
    %200 = vmatprep.subr.bf16.mxu0 0
    %201 = vmatpush1.bf16.xpose.msra.mxu0 0
    %202 = vmatprep.subr.bf16.mxu0 0
    %203 = vmatpush1.bf16.xpose.msra.mxu0 %v186
    %204 = vmatprep.subr.bf16.mxu0 0
    %205 = vmatpush2.bf16.xpose.msra.mxu0 0
    %206 = vmatprep.subr.bf16.mxu0 0
    %207 = vmatpush2.bf16.xpose.msra.mxu0 0
    %208 = vmatprep.subr.bf16.mxu0 0
    %209 = vmatpush2.bf16.xpose.msra.mxu0 0
    %210 = vmatprep.subr.bf16.mxu0 0
    %211 = vmatpush2.bf16.xpose.msra.mxu0 0
    %212 = vmatprep.subr.bf16.mxu0 0
    %213 = vmatpush2.bf16.xpose.msra.mxu0 0
    %214 = vmatprep.subr.bf16.mxu0 0
    %215 = vmatpush2.bf16.xpose.msra.mxu0 0
    %216 = vmatprep.subr.bf16.mxu0 0
    %217 = vmatpush2.bf16.xpose.msra.mxu0 0
    %218 = vmatprep.subr.bf16.mxu0 0
    %219 = vmatpush2.bf16.xpose.msra.mxu0 0
    %220 = vmatprep.mubr.bf16.mxu0 0
    %221 = vmatmul.mubr.bf16.gmra.mxu0 %v183
    %v222 = vpop.f32.mrf.mxu0
    %v223 = vadd.f32 0.0, %v222
    %v224 = vpop.f32.mrf.mxu0
    %v225 = vpop.f32.mrf.mxu0
    %v226 = vpop.f32.mrf.mxu0
    %227 = vdwg.mxu0
    %vm228 = vcmp.gt.f32.partialorder %v54, 0.0
    %vm229 = vcmp.gt.f32.partialorder %v55, 0.0
    %v230 = vsel %vm228, 1, 0
    %v231 = vsel %vm229, 1, 0
    %v232 = vlaneseq
    %v233 = vshrl.u32 %v232, 7
    %v234 = vsub.s32 0, %v233
    %v235 = vrot.slane %v230, %v234
    %v236 = vlaneseq
    %v237 = vshrl.u32 %v236, 7
    %v238 = vsub.s32 0, %v237
    %v239 = vrot.slane %v231, %v238
    %vm240 = vcmp.eq.s32.totalorder %v235, 1
    %vm241 = vcmp.eq.s32.totalorder %v239, 1
    %v242 = vsel %vm240, %v174, -1e+09
    %v243 = vsel %vm241, %v223, -1e+09
    %v244 = vsel %vm132, %v242, -inf
    %245 = vmax.xlane.f32.xlu0 %v244
    %v246 = vpop.xlane.xlu0 %245
    %v247 = vsel %vm132, %v243, -inf
    %248 = vmax.xlane.f32.xlu0 %v247
    %v249 = vpop.xlane.xlu0 %248
    %v250 = vsub.f32 %v242, %v246
    %v251 = vsub.f32 %v243, %v249
    %v252 = vmul.f32 %v250, 1.442695
    %v253 = vpow.pop %v252
    %v254 = vmul.f32 %v251, 1.442695
    %v255 = vpow.pop %v254
    %v256 = vsel %vm132, %v253, 0.0
    %257 = vadd.xlane.f32.xlu0 %v256
    %v258 = vpop.xlane.xlu0 %257
    %v259 = vsel %vm132, %v255, 0.0
    %260 = vadd.xlane.f32.xlu0 %v259
    %v261 = vpop.xlane.xlu0 %260
    %v262 = vrcp.pop %v258
    %v263 = vrcp.pop %v261
    %v264 = vmul.f32 %v253, %v262
    %v265 = vmul.f32 %v255, %v263
    %v266 = vpack.c.bf16 %v264, %v264
    %v267 = vpack.c.bf16 %v265, %v265
    %268 = vrot.lane.b32.xlu0 %v127, 96
    %v269 = vpop.permute.xlu0 %268
    %v271 = vsel %vm132, %v266, 0
    %vm273 = vcmask 1043456
    %v275 = vsel %vm273, %v269, 0
    %277 = vmatprep.subr.bf16.mxu0 0
    %278 = vmatpush1.bf16.msra.mxu0 0
    %279 = vmatprep.subr.bf16.mxu0 0
    %280 = vmatpush1.bf16.msra.mxu0 0
    %281 = vmatprep.subr.bf16.mxu0 0
    %282 = vmatpush1.bf16.msra.mxu0 0
    %283 = vmatprep.subr.bf16.mxu0 0
    %284 = vmatpush1.bf16.msra.mxu0 0
    %285 = vmatprep.subr.bf16.mxu0 0
    %286 = vmatpush1.bf16.msra.mxu0 0
    %287 = vmatprep.subr.bf16.mxu0 0
    %288 = vmatpush1.bf16.msra.mxu0 0
    %289 = vmatprep.subr.bf16.mxu0 0
    %290 = vmatpush1.bf16.msra.mxu0 0
    %291 = vmatprep.subr.bf16.mxu0 0
    %292 = vmatpush1.bf16.msra.mxu0 %v275
    %293 = vmatprep.subr.bf16.mxu0 0
    %294 = vmatpush2.bf16.msra.mxu0 0
    %295 = vmatprep.subr.bf16.mxu0 0
    %296 = vmatpush2.bf16.msra.mxu0 0
    %297 = vmatprep.subr.bf16.mxu0 0
    %298 = vmatpush2.bf16.msra.mxu0 0
    %299 = vmatprep.subr.bf16.mxu0 0
    %300 = vmatpush2.bf16.msra.mxu0 0
    %301 = vmatprep.subr.bf16.mxu0 0
    %302 = vmatpush2.bf16.msra.mxu0 0
    %303 = vmatprep.subr.bf16.mxu0 0
    %304 = vmatpush2.bf16.msra.mxu0 0
    %305 = vmatprep.subr.bf16.mxu0 0
    %306 = vmatpush2.bf16.msra.mxu0 0
    %307 = vmatprep.subr.bf16.mxu0 0
    %308 = vmatpush2.bf16.msra.mxu0 0
    %309 = vmatprep.mubr.bf16.mxu0 0
    %310 = vmatmul.mubr.bf16.gmra.mxu0 %v271
    %v311 = vpop.f32.mrf.mxu0
    %v312 = vadd.f32 0.0, %v311
    %v313 = vpop.f32.mrf.mxu0
    %v314 = vpop.f32.mrf.mxu0
    %v315 = vpop.f32.mrf.mxu0
    %316 = vdwg.mxu0
    %317 = vrot.lane.b32.xlu0 %v128, 96
    %v318 = vpop.permute.xlu0 %317
    %v320 = vsel %vm132, %v267, 0
    %v323 = vsel %vm273, %v318, 0
    %325 = vmatprep.subr.bf16.mxu0 0
    %326 = vmatpush1.bf16.msra.mxu0 0
    %327 = vmatprep.subr.bf16.mxu0 0
    %328 = vmatpush1.bf16.msra.mxu0 0
    %329 = vmatprep.subr.bf16.mxu0 0
    %330 = vmatpush1.bf16.msra.mxu0 0
    %331 = vmatprep.subr.bf16.mxu0 0
    %332 = vmatpush1.bf16.msra.mxu0 0
    %333 = vmatprep.subr.bf16.mxu0 0
    %334 = vmatpush1.bf16.msra.mxu0 0
    %335 = vmatprep.subr.bf16.mxu0 0
    %336 = vmatpush1.bf16.msra.mxu0 0
    %337 = vmatprep.subr.bf16.mxu0 0
    %338 = vmatpush1.bf16.msra.mxu0 0
    %339 = vmatprep.subr.bf16.mxu0 0
    %340 = vmatpush1.bf16.msra.mxu0 %v323
    %341 = vmatprep.subr.bf16.mxu0 0
    %342 = vmatpush2.bf16.msra.mxu0 0
    %343 = vmatprep.subr.bf16.mxu0 0
    %344 = vmatpush2.bf16.msra.mxu0 0
    %345 = vmatprep.subr.bf16.mxu0 0
    %346 = vmatpush2.bf16.msra.mxu0 0
    %347 = vmatprep.subr.bf16.mxu0 0
    %348 = vmatpush2.bf16.msra.mxu0 0
    %349 = vmatprep.subr.bf16.mxu0 0
    %350 = vmatpush2.bf16.msra.mxu0 0
    %351 = vmatprep.subr.bf16.mxu0 0
    %352 = vmatpush2.bf16.msra.mxu0 0
    %353 = vmatprep.subr.bf16.mxu0 0
    %354 = vmatpush2.bf16.msra.mxu0 0
    %355 = vmatprep.subr.bf16.mxu0 0
    %356 = vmatpush2.bf16.msra.mxu0 0
    %357 = vmatprep.mubr.bf16.mxu0 0
    %358 = vmatmul.mubr.bf16.gmra.mxu0 %v320
    %v359 = vpop.f32.mrf.mxu0
    %v360 = vadd.f32 0.0, %v359
    %v361 = vpop.f32.mrf.mxu0
    %v362 = vpop.f32.mrf.mxu0
    %v363 = vpop.f32.mrf.mxu0
    %364 = vdwg.mxu0
    %365 = vst.msk [vmem:[#allocation2] sm:$0xff] %vm132, %v312
    %366 = vst.msk [vmem:[#allocation2 + $0x8] sm:$0xff] %vm132, %v360
    %367 = vrot.lane.b32.xlu0 %v127, 120
    %v368 = vpop.permute.xlu0 %367
    %369 = vrot.lane.b32.xlu0 %v127, 104
    %v370 = vpop.permute.xlu0 %369
    %v372 = vsel %vm132, %v368, 0
    %v375 = vsel %vm132, %v370, 0
    %377 = vmatprep.subr.bf16.mxu0 0
    %378 = vmatpush1.bf16.xpose.msra.mxu0 0
    %379 = vmatprep.subr.bf16.mxu0 0
    %380 = vmatpush1.bf16.xpose.msra.mxu0 0
    %381 = vmatprep.subr.bf16.mxu0 0
    %382 = vmatpush1.bf16.xpose.msra.mxu0 0
    %383 = vmatprep.subr.bf16.mxu0 0
    %384 = vmatpush1.bf16.xpose.msra.mxu0 0
    %385 = vmatprep.subr.bf16.mxu0 0
    %386 = vmatpush1.bf16.xpose.msra.mxu0 0
    %387 = vmatprep.subr.bf16.mxu0 0
    %388 = vmatpush1.bf16.xpose.msra.mxu0 0
    %389 = vmatprep.subr.bf16.mxu0 0
    %390 = vmatpush1.bf16.xpose.msra.mxu0 0
    %391 = vmatprep.subr.bf16.mxu0 0
    %392 = vmatpush1.bf16.xpose.msra.mxu0 %v375
    %393 = vmatprep.subr.bf16.mxu0 0
    %394 = vmatpush2.bf16.xpose.msra.mxu0 0
    %395 = vmatprep.subr.bf16.mxu0 0
    %396 = vmatpush2.bf16.xpose.msra.mxu0 0
    %397 = vmatprep.subr.bf16.mxu0 0
    %398 = vmatpush2.bf16.xpose.msra.mxu0 0
    %399 = vmatprep.subr.bf16.mxu0 0
    %400 = vmatpush2.bf16.xpose.msra.mxu0 0
    %401 = vmatprep.subr.bf16.mxu0 0
    %402 = vmatpush2.bf16.xpose.msra.mxu0 0
    %403 = vmatprep.subr.bf16.mxu0 0
    %404 = vmatpush2.bf16.xpose.msra.mxu0 0
    %405 = vmatprep.subr.bf16.mxu0 0
    %406 = vmatpush2.bf16.xpose.msra.mxu0 0
    %407 = vmatprep.subr.bf16.mxu0 0
    %408 = vmatpush2.bf16.xpose.msra.mxu0 0
    %409 = vmatprep.mubr.bf16.mxu0 0
    %410 = vmatmul.mubr.bf16.gmra.mxu0 %v372
    %v411 = vpop.f32.mrf.mxu0
    %v412 = vadd.f32 0.0, %v411
    %v413 = vpop.f32.mrf.mxu0
    %v414 = vpop.f32.mrf.mxu0
    %v415 = vpop.f32.mrf.mxu0
    %416 = vdwg.mxu0
    %417 = vrot.lane.b32.xlu0 %v128, 120
    %v418 = vpop.permute.xlu0 %417
    %419 = vrot.lane.b32.xlu0 %v128, 104
    %v420 = vpop.permute.xlu0 %419
    %v422 = vsel %vm132, %v418, 0
    %v425 = vsel %vm132, %v420, 0
    %427 = vmatprep.subr.bf16.mxu0 0
    %428 = vmatpush1.bf16.xpose.msra.mxu0 0
    %429 = vmatprep.subr.bf16.mxu0 0
    %430 = vmatpush1.bf16.xpose.msra.mxu0 0
    %431 = vmatprep.subr.bf16.mxu0 0
    %432 = vmatpush1.bf16.xpose.msra.mxu0 0
    %433 = vmatprep.subr.bf16.mxu0 0
    %434 = vmatpush1.bf16.xpose.msra.mxu0 0
    %435 = vmatprep.subr.bf16.mxu0 0
    %436 = vmatpush1.bf16.xpose.msra.mxu0 0
    %437 = vmatprep.subr.bf16.mxu0 0
    %438 = vmatpush1.bf16.xpose.msra.mxu0 0
    %439 = vmatprep.subr.bf16.mxu0 0
    %440 = vmatpush1.bf16.xpose.msra.mxu0 0
    %441 = vmatprep.subr.bf16.mxu0 0
    %442 = vmatpush1.bf16.xpose.msra.mxu0 %v425
    %443 = vmatprep.subr.bf16.mxu0 0
    %444 = vmatpush2.bf16.xpose.msra.mxu0 0
    %445 = vmatprep.subr.bf16.mxu0 0
    %446 = vmatpush2.bf16.xpose.msra.mxu0 0
    %447 = vmatprep.subr.bf16.mxu0 0
    %448 = vmatpush2.bf16.xpose.msra.mxu0 0
    %449 = vmatprep.subr.bf16.mxu0 0
    %450 = vmatpush2.bf16.xpose.msra.mxu0 0
    %451 = vmatprep.subr.bf16.mxu0 0
    %452 = vmatpush2.bf16.xpose.msra.mxu0 0
    %453 = vmatprep.subr.bf16.mxu0 0
    %454 = vmatpush2.bf16.xpose.msra.mxu0 0
    %455 = vmatprep.subr.bf16.mxu0 0
    %456 = vmatpush2.bf16.xpose.msra.mxu0 0
    %457 = vmatprep.subr.bf16.mxu0 0
    %458 = vmatpush2.bf16.xpose.msra.mxu0 0
    %459 = vmatprep.mubr.bf16.mxu0 0
    %460 = vmatmul.mubr.bf16.gmra.mxu0 %v422
    %v461 = vpop.f32.mrf.mxu0
    %v462 = vadd.f32 0.0, %v461
    %v463 = vpop.f32.mrf.mxu0
    %v464 = vpop.f32.mrf.mxu0
    %v465 = vpop.f32.mrf.mxu0
    %466 = vdwg.mxu0
    %v467 = vsel %vm240, %v412, -1e+09
    %v468 = vsel %vm241, %v462, -1e+09
    %v469 = vsel %vm132, %v467, -inf
    %470 = vmax.xlane.f32.xlu0 %v469
    %v471 = vpop.xlane.xlu0 %470
    %v472 = vsel %vm132, %v468, -inf
    %473 = vmax.xlane.f32.xlu0 %v472
    %v474 = vpop.xlane.xlu0 %473
    %v475 = vsub.f32 %v467, %v471
    %v476 = vsub.f32 %v468, %v474
    %v477 = vmul.f32 %v475, 1.442695
    %v478 = vpow.pop %v477
    %v479 = vmul.f32 %v476, 1.442695
    %v480 = vpow.pop %v479
    %v481 = vsel %vm132, %v478, 0.0
    %482 = vadd.xlane.f32.xlu0 %v481
    %v483 = vpop.xlane.xlu0 %482
    %v484 = vsel %vm132, %v480, 0.0
    %485 = vadd.xlane.f32.xlu0 %v484
    %v486 = vpop.xlane.xlu0 %485
    %v487 = vrcp.pop %v483
    %v488 = vrcp.pop %v486
    %v489 = vmul.f32 %v478, %v487
    %v490 = vmul.f32 %v480, %v488
    %v491 = vpack.c.bf16 %v489, %v489
    %v492 = vpack.c.bf16 %v490, %v490
    %493 = vrot.lane.b32.xlu0 %v127, 88
    %v494 = vpop.permute.xlu0 %493
    %v496 = vsel %vm132, %v491, 0
    %v499 = vsel %vm273, %v494, 0
    %501 = vmatprep.subr.bf16.mxu0 0
    %502 = vmatpush1.bf16.msra.mxu0 0
    %503 = vmatprep.subr.bf16.mxu0 0
    %504 = vmatpush1.bf16.msra.mxu0 0
    %505 = vmatprep.subr.bf16.mxu0 0
    %506 = vmatpush1.bf16.msra.mxu0 0
    %507 = vmatprep.subr.bf16.mxu0 0
    %508 = vmatpush1.bf16.msra.mxu0 0
    %509 = vmatprep.subr.bf16.mxu0 0
    %510 = vmatpush1.bf16.msra.mxu0 0
    %511 = vmatprep.subr.bf16.mxu0 0
    %512 = vmatpush1.bf16.msra.mxu0 0
    %513 = vmatprep.subr.bf16.mxu0 0
    %514 = vmatpush1.bf16.msra.mxu0 0
    %515 = vmatprep.subr.bf16.mxu0 0
    %516 = vmatpush1.bf16.msra.mxu0 %v499
    %517 = vmatprep.subr.bf16.mxu0 0
    %518 = vmatpush2.bf16.msra.mxu0 0
    %519 = vmatprep.subr.bf16.mxu0 0
    %520 = vmatpush2.bf16.msra.mxu0 0
    %521 = vmatprep.subr.bf16.mxu0 0
    %522 = vmatpush2.bf16.msra.mxu0 0
    %523 = vmatprep.subr.bf16.mxu0 0
    %524 = vmatpush2.bf16.msra.mxu0 0
    %525 = vmatprep.subr.bf16.mxu0 0
    %526 = vmatpush2.bf16.msra.mxu0 0
    %527 = vmatprep.subr.bf16.mxu0 0
    %528 = vmatpush2.bf16.msra.mxu0 0
    %529 = vmatprep.subr.bf16.mxu0 0
    %530 = vmatpush2.bf16.msra.mxu0 0
    %531 = vmatprep.subr.bf16.mxu0 0
    %532 = vmatpush2.bf16.msra.mxu0 0
    %533 = vmatprep.mubr.bf16.mxu0 0
    %534 = vmatmul.mubr.bf16.gmra.mxu0 %v496
    %v535 = vpop.f32.mrf.mxu0
    %v536 = vadd.f32 0.0, %v535
    %v537 = vpop.f32.mrf.mxu0
    %v538 = vpop.f32.mrf.mxu0
    %v539 = vpop.f32.mrf.mxu0
    %540 = vdwg.mxu0
    %541 = vrot.lane.b32.xlu0 %v128, 88
    %v542 = vpop.permute.xlu0 %541
    %v544 = vsel %vm132, %v492, 0
    %v547 = vsel %vm273, %v542, 0
    %549 = vmatprep.subr.bf16.mxu0 0
    %550 = vmatpush1.bf16.msra.mxu0 0
    %551 = vmatprep.subr.bf16.mxu0 0
    %552 = vmatpush1.bf16.msra.mxu0 0
    %553 = vmatprep.subr.bf16.mxu0 0
    %554 = vmatpush1.bf16.msra.mxu0 0
    %555 = vmatprep.subr.bf16.mxu0 0
    %556 = vmatpush1.bf16.msra.mxu0 0
    %557 = vmatprep.subr.bf16.mxu0 0
    %558 = vmatpush1.bf16.msra.mxu0 0
    %559 = vmatprep.subr.bf16.mxu0 0
    %560 = vmatpush1.bf16.msra.mxu0 0
    %561 = vmatprep.subr.bf16.mxu0 0
    %562 = vmatpush1.bf16.msra.mxu0 0
    %563 = vmatprep.subr.bf16.mxu0 0
    %564 = vmatpush1.bf16.msra.mxu0 %v547
    %565 = vmatprep.subr.bf16.mxu0 0
    %566 = vmatpush2.bf16.msra.mxu0 0
    %567 = vmatprep.subr.bf16.mxu0 0
    %568 = vmatpush2.bf16.msra.mxu0 0
    %569 = vmatprep.subr.bf16.mxu0 0
    %570 = vmatpush2.bf16.msra.mxu0 0
    %571 = vmatprep.subr.bf16.mxu0 0
    %572 = vmatpush2.bf16.msra.mxu0 0
    %573 = vmatprep.subr.bf16.mxu0 0
    %574 = vmatpush2.bf16.msra.mxu0 0
    %575 = vmatprep.subr.bf16.mxu0 0
    %576 = vmatpush2.bf16.msra.mxu0 0
    %577 = vmatprep.subr.bf16.mxu0 0
    %578 = vmatpush2.bf16.msra.mxu0 0
    %579 = vmatprep.subr.bf16.mxu0 0
    %580 = vmatpush2.bf16.msra.mxu0 0
    %581 = vmatprep.mubr.bf16.mxu0 0
    %582 = vmatmul.mubr.bf16.gmra.mxu0 %v544
    %v583 = vpop.f32.mrf.mxu0
    %v584 = vadd.f32 0.0, %v583
    %v585 = vpop.f32.mrf.mxu0
    %v586 = vpop.f32.mrf.mxu0
    %v587 = vpop.f32.mrf.mxu0
    %588 = vdwg.mxu0
    %591 = vrot.lane.b32.xlu0 %v536, 8
    %v592 = vpop.permute.xlu0 %591
    %593 = vrot.lane.b32.xlu0 %v584, 8
    %v594 = vpop.permute.xlu0 %593
    %vm597 = vcmask 130112
    %598 = vst.msk [vmem:[#allocation2] sm:$0xff] %vm597, %v592
    %599 = vst.msk [vmem:[#allocation2 + $0x8] sm:$0xff] %vm597, %v594
    %v600 = vld [vmem:[#allocation2] sm:$0xff]
    %v601 = vld [vmem:[#allocation2 + $0x8] sm:$0xff]
    %v602 = vpack.c.bf16 %v601, %v600
    %v603 = vld [vmem:[%s5] sm:$0xf]
    %v604 = vld [vmem:[%s5 + $0x4] sm:$0xf]
    %v605 = vld [vmem:[%s6] sm:$0x1]
    %v607 = vlaneseq
    %v608 = vshrl.u32 %v607, 7
    %v609 = vsub.s32 0, %v608
    %v610 = vrot.slane %v605, %v609
    %v614 = vunpack.c.l.b16 %v603
    %v615 = vunpack.c.l.b16 %v604
    %v616 = vpack.c.b16 %v615, %v614
    %vm618 = vcmask 130048
    %v620 = vsel %vm618, %v602, 0
    %622 = vmatprep.subr.bf16.mxu0 0
    %623 = vmatpush1.bf16.msra.mxu0 0
    %624 = vmatprep.subr.bf16.mxu0 0
    %625 = vmatpush1.bf16.msra.mxu0 0
    %626 = vmatprep.subr.bf16.mxu0 0
    %627 = vmatpush1.bf16.msra.mxu0 0
    %628 = vmatprep.subr.bf16.mxu0 0
    %629 = vmatpush1.bf16.msra.mxu0 0
    %630 = vmatprep.subr.bf16.mxu0 0
    %631 = vmatpush1.bf16.msra.mxu0 0
    %632 = vmatprep.subr.bf16.mxu0 0
    %633 = vmatpush1.bf16.msra.mxu0 0
    %634 = vmatprep.subr.bf16.mxu0 0
    %635 = vmatpush1.bf16.msra.mxu0 0
    %636 = vmatprep.subr.bf16.mxu0 0
    %637 = vmatpush1.bf16.msra.mxu0 %v616
    %638 = vmatprep.subr.bf16.mxu0 0
    %639 = vmatpush2.bf16.msra.mxu0 0
    %640 = vmatprep.subr.bf16.mxu0 0
    %641 = vmatpush2.bf16.msra.mxu0 0
    %642 = vmatprep.subr.bf16.mxu0 0
    %643 = vmatpush2.bf16.msra.mxu0 0
    %644 = vmatprep.subr.bf16.mxu0 0
    %645 = vmatpush2.bf16.msra.mxu0 0
    %646 = vmatprep.subr.bf16.mxu0 0
    %647 = vmatpush2.bf16.msra.mxu0 0
    %648 = vmatprep.subr.bf16.mxu0 0
    %649 = vmatpush2.bf16.msra.mxu0 0
    %650 = vmatprep.subr.bf16.mxu0 0
    %651 = vmatpush2.bf16.msra.mxu0 0
    %652 = vmatprep.subr.bf16.mxu0 0
    %653 = vmatpush2.bf16.msra.mxu0 0
    %654 = vmatprep.mubr.bf16.mxu0 0
    %655 = vmatmul.mubr.bf16.gmra.mxu0 %v620
    %v656 = vpop.f32.mrf.mxu0
    %v657 = vadd.f32 %v610, %v656
    %v658 = vpop.f32.mrf.mxu0
    %v659 = vpop.f32.mrf.mxu0
    %v660 = vadd.f32 %v610, %v659
    %v661 = vpop.f32.mrf.mxu0
    %662 = vdwg.mxu0
    %v663 = vadd.f32 %v657, %v52
    %v664 = vadd.f32 %v660, %v53
    %v665 = vld [vmem:[%s7] sm:$0x1]
    %v666 = vld [vmem:[%s8] sm:$0x1]
    %v667 = vsel %vm82, %v663, 0.0
    %668 = vadd.xlane.f32.xlu0 %v667
    %v669 = vpop.xlane.xlu0 %668
    %v670 = vsel %vm82, %v664, 0.0
    %671 = vadd.xlane.f32.xlu0 %v670
    %v672 = vpop.xlane.xlu0 %671
    %v673 = vrcp.pop 32.0
    %v674 = vmul.f32 %v669, %v673
    %v675 = vmul.f32 %v672, %v673
    %v676 = vmul.f32 %v663, %v663
    %v677 = vmul.f32 %v664, %v664
    %v678 = vsel %vm82, %v676, 0.0
    %679 = vadd.xlane.f32.xlu0 %v678
    %v680 = vpop.xlane.xlu0 %679
    %v681 = vsel %vm82, %v677, 0.0
    %682 = vadd.xlane.f32.xlu0 %v681
    %v683 = vpop.xlane.xlu0 %682
    %v684 = vmul.f32 %v680, %v673
    %v685 = vmul.f32 %v683, %v673
    %v686 = vmul.f32 %v674, %v674
    %v687 = vmul.f32 %v675, %v675
    %v688 = vsub.f32 %v684, %v686
    %v689 = vsub.f32 %v685, %v687
    %v690 = vadd.f32 %v688, 1e-05
    %v691 = vadd.f32 %v689, 1e-05
    %v692 = vrsqrt.pop %v690
    %v693 = vrsqrt.pop %v691
    %v694 = vsub.f32 %v663, %v674
    %v695 = vsub.f32 %v664, %v675
    %v696 = vmul.f32 %v694, %v692
    %v697 = vmul.f32 %v695, %v693
    %v699 = vlaneseq
    %v700 = vshrl.u32 %v699, 7
    %v701 = vsub.s32 0, %v700
    %v702 = vrot.slane %v665, %v701
    %v704 = vmul.f32 %v696, %v702
    %v705 = vmul.f32 %v697, %v702
    %v707 = vlaneseq
    %v708 = vshrl.u32 %v707, 7
    %v709 = vsub.s32 0, %v708
    %v710 = vrot.slane %v666, %v709
    %v712 = vadd.f32 %v704, %v710
    %v713 = vadd.f32 %v705, %v710
    %715 = vset.pattern.permute.xlu0 0
    %716 = vperm.xlu0 %715, %v56
    %v717 = vpop.permute.xlu0 %716
    %720 = vset.pattern.permute.xlu0 0
    %721 = vperm.xlu0 %720, %v57
    %v722 = vpop.permute.xlu0 %721
    %v724 = vmul.f32 %v712, %v717
    %v725 = vmul.f32 %v713, %v722
    %v726 = vpack.c.bf16 %v725, %v724
    %v727 = vld [vmem:[%s9] sm:$0xf]
    %v728 = vld [vmem:[%s9 + $0x4] sm:$0xf]
    %v729 = vld [vmem:[%s9 + $0x8] sm:$0xf]
    %v730 = vld [vmem:[%s9 + $0xc] sm:$0xf]
    %v731 = vld [vmem:[%s10] sm:$0x1]
    %v733 = vlaneseq
    %v734 = vshrl.u32 %v733, 7
    %v735 = vsub.s32 0, %v734
    %v736 = vrot.slane %v731, %v735
    %v742 = vunpack.c.l.b16 %v727
    %v743 = vunpack.c.l.b16 %v728
    %v744 = vunpack.c.l.b16 %v729
    %v745 = vunpack.c.l.b16 %v730
    %v746 = vpack.c.b16 %v743, %v742
    %v747 = vpack.c.b16 %v745, %v744
    %v751 = vsel %vm82, %v726, 0
    %753 = vmatprep.subr.bf16.mxu0 0
    %754 = vmatpush1.bf16.msra.mxu0 0
    %755 = vmatprep.subr.bf16.mxu0 0
    %756 = vmatpush1.bf16.msra.mxu0 0
    %757 = vmatprep.subr.bf16.mxu0 0
    %758 = vmatpush1.bf16.msra.mxu0 0
    %759 = vmatprep.subr.bf16.mxu0 0
    %760 = vmatpush1.bf16.msra.mxu0 0
    %761 = vmatprep.subr.bf16.mxu0 0
    %762 = vmatpush1.bf16.msra.mxu0 0
    %763 = vmatprep.subr.bf16.mxu0 0
    %764 = vmatpush1.bf16.msra.mxu0 0
    %765 = vmatprep.subr.bf16.mxu0 0
    %766 = vmatpush1.bf16.msra.mxu0 %v747
    %767 = vmatprep.subr.bf16.mxu0 0
    %768 = vmatpush1.bf16.msra.mxu0 %v746
    %769 = vmatprep.subr.bf16.mxu0 0
    %770 = vmatpush2.bf16.msra.mxu0 0
    %771 = vmatprep.subr.bf16.mxu0 0
    %772 = vmatpush2.bf16.msra.mxu0 0
    %773 = vmatprep.subr.bf16.mxu0 0
    %774 = vmatpush2.bf16.msra.mxu0 0
    %775 = vmatprep.subr.bf16.mxu0 0
    %776 = vmatpush2.bf16.msra.mxu0 0
    %777 = vmatprep.subr.bf16.mxu0 0
    %778 = vmatpush2.bf16.msra.mxu0 0
    %779 = vmatprep.subr.bf16.mxu0 0
    %780 = vmatpush2.bf16.msra.mxu0 0
    %781 = vmatprep.subr.bf16.mxu0 0
    %782 = vmatpush2.bf16.msra.mxu0 0
    %783 = vmatprep.subr.bf16.mxu0 0
    %784 = vmatpush2.bf16.msra.mxu0 0
    %785 = vmatprep.mubr.bf16.mxu0 0
    %786 = vmatmul.mubr.bf16.gmra.mxu0 %v751
    %v787 = vpop.f32.mrf.mxu0
    %v788 = vadd.f32 %v736, %v787
    %v789 = vpop.f32.mrf.mxu0
    %v790 = vpop.f32.mrf.mxu0
    %v791 = vadd.f32 %v736, %v790
    %v792 = vpop.f32.mrf.mxu0
    %793 = vdwg.mxu0
    %v794 = vmax.f32 %v788, 0.0
    %v795 = vmax.f32 %v791, 0.0
    %v796 = vpack.c.bf16 %v795, %v794
    %v797 = vld [vmem:[%s11] sm:$0xf]
    %v798 = vld [vmem:[%s11 + $0x4] sm:$0xf]
    %v799 = vld [vmem:[%s11 + $0x8] sm:$0xf]
    %v800 = vld [vmem:[%s11 + $0xc] sm:$0xf]
    %v801 = vld [vmem:[%s11 + $0x10] sm:$0xf]
    %v802 = vld [vmem:[%s11 + $0x14] sm:$0xf]
    %v803 = vld [vmem:[%s11 + $0x18] sm:$0xf]
    %v804 = vld [vmem:[%s11 + $0x1c] sm:$0xf]
    %v805 = vld [vmem:[%s12] sm:$0x1]
    %v807 = vlaneseq
    %v808 = vshrl.u32 %v807, 7
    %v809 = vsub.s32 0, %v808
    %v810 = vrot.slane %v805, %v809
    %v820 = vunpack.c.l.b16 %v797
    %v821 = vunpack.c.l.b16 %v798
    %v822 = vunpack.c.l.b16 %v799
    %v823 = vunpack.c.l.b16 %v800
    %v824 = vunpack.c.l.b16 %v801
    %v825 = vunpack.c.l.b16 %v802
    %v826 = vunpack.c.l.b16 %v803
    %v827 = vunpack.c.l.b16 %v804
    %v828 = vpack.c.b16 %v821, %v820
    %v829 = vpack.c.b16 %v823, %v822
    %v830 = vpack.c.b16 %v825, %v824
    %v831 = vpack.c.b16 %v827, %v826
    %vm836 = vcmask 523264
    %v838 = vsel %vm836, %v796, 0
    %840 = vmatprep.subr.bf16.mxu0 0
    %841 = vmatpush1.bf16.msra.mxu0 0
    %842 = vmatprep.subr.bf16.mxu0 0
    %843 = vmatpush1.bf16.msra.mxu0 0
    %844 = vmatprep.subr.bf16.mxu0 0
    %845 = vmatpush1.bf16.msra.mxu0 0
    %846 = vmatprep.subr.bf16.mxu0 0
    %847 = vmatpush1.bf16.msra.mxu0 0
    %848 = vmatprep.subr.bf16.mxu0 0
    %849 = vmatpush1.bf16.msra.mxu0 %v831
    %850 = vmatprep.subr.bf16.mxu0 0
    %851 = vmatpush1.bf16.msra.mxu0 %v830
    %852 = vmatprep.subr.bf16.mxu0 0
    %853 = vmatpush1.bf16.msra.mxu0 %v829
    %854 = vmatprep.subr.bf16.mxu0 0
    %855 = vmatpush1.bf16.msra.mxu0 %v828
    %856 = vmatprep.subr.bf16.mxu0 0
    %857 = vmatpush2.bf16.msra.mxu0 0
    %858 = vmatprep.subr.bf16.mxu0 0
    %859 = vmatpush2.bf16.msra.mxu0 0
    %860 = vmatprep.subr.bf16.mxu0 0
    %861 = vmatpush2.bf16.msra.mxu0 0
    %862 = vmatprep.subr.bf16.mxu0 0
    %863 = vmatpush2.bf16.msra.mxu0 0
    %864 = vmatprep.subr.bf16.mxu0 0
    %865 = vmatpush2.bf16.msra.mxu0 0
    %866 = vmatprep.subr.bf16.mxu0 0
    %867 = vmatpush2.bf16.msra.mxu0 0
    %868 = vmatprep.subr.bf16.mxu0 0
    %869 = vmatpush2.bf16.msra.mxu0 0
    %870 = vmatprep.subr.bf16.mxu0 0
    %871 = vmatpush2.bf16.msra.mxu0 0
    %872 = vmatprep.mubr.bf16.mxu0 0
    %873 = vmatmul.mubr.bf16.gmra.mxu0 %v838
    %v874 = vpop.f32.mrf.mxu0
    %v875 = vadd.f32 %v810, %v874
    %v876 = vpop.f32.mrf.mxu0
    %v877 = vpop.f32.mrf.mxu0
    %v878 = vadd.f32 %v810, %v877
    %v879 = vpop.f32.mrf.mxu0
    %880 = vdwg.mxu0
    %v881 = vadd.f32 %v875, %v724
    %v882 = vadd.f32 %v878, %v725
    %v883 = vld [vmem:[%s13] sm:$0x1]
    %v884 = vld [vmem:[%s14] sm:$0x1]
    %v885 = vsel %vm82, %v881, 0.0
    %886 = vadd.xlane.f32.xlu0 %v885
    %v887 = vpop.xlane.xlu0 %886
    %v888 = vsel %vm82, %v882, 0.0
    %889 = vadd.xlane.f32.xlu0 %v888
    %v890 = vpop.xlane.xlu0 %889
    %v891 = vmul.f32 %v887, %v673
    %v892 = vmul.f32 %v890, %v673
    %v893 = vmul.f32 %v881, %v881
    %v894 = vmul.f32 %v882, %v882
    %v895 = vsel %vm82, %v893, 0.0
    %896 = vadd.xlane.f32.xlu0 %v895
    %v897 = vpop.xlane.xlu0 %896
    %v898 = vsel %vm82, %v894, 0.0
    %899 = vadd.xlane.f32.xlu0 %v898
    %v900 = vpop.xlane.xlu0 %899
    %v901 = vmul.f32 %v897, %v673
    %v902 = vmul.f32 %v900, %v673
    %v903 = vmul.f32 %v891, %v891
    %v904 = vmul.f32 %v892, %v892
    %v905 = vsub.f32 %v901, %v903
    %v906 = vsub.f32 %v902, %v904
    %v907 = vadd.f32 %v905, 1e-05
    %v908 = vadd.f32 %v906, 1e-05
    %v909 = vrsqrt.pop %v907
    %v910 = vrsqrt.pop %v908
    %v911 = vsub.f32 %v881, %v891
    %v912 = vsub.f32 %v882, %v892
    %v913 = vmul.f32 %v911, %v909
    %v914 = vmul.f32 %v912, %v910
    %v916 = vlaneseq
    %v917 = vshrl.u32 %v916, 7
    %v918 = vsub.s32 0, %v917
    %v919 = vrot.slane %v883, %v918
    %v921 = vmul.f32 %v913, %v919
    %v922 = vmul.f32 %v914, %v919
    %v924 = vlaneseq
    %v925 = vshrl.u32 %v924, 7
    %v926 = vsub.s32 0, %v925
    %v927 = vrot.slane %v884, %v926
    %v929 = vadd.f32 %v921, %v927
    %v930 = vadd.f32 %v922, %v927
    %v931 = vmul.f32 %v929, %v717
    %v932 = vmul.f32 %v930, %v722
    %v933 = vpack.c.bf16 %v932, %v931
    %s934 = scalar_lea.vmem %s3, 16
    %v935 = vld [vmem:[%s934] sm:$0xf]
    %v936 = vld [vmem:[%s934 + $0x4] sm:$0xf]
    %v937 = vld [vmem:[%s934 + $0x8] sm:$0xf]
    %v938 = vld [vmem:[%s934 + $0xc] sm:$0xf]
    %s939 = scalar_lea.vmem %s4, 1
    %v940 = vld [vmem:[%s939] sm:$0x1]
    %v942 = vlaneseq
    %v943 = vshrl.u32 %v942, 7
    %v944 = vsub.s32 0, %v943
    %v945 = vrot.slane %v940, %v944
    %v951 = vunpack.c.l.b16 %v935
    %v952 = vunpack.c.l.b16 %v936
    %v953 = vunpack.c.l.b16 %v937
    %v954 = vunpack.c.l.b16 %v938
    %v955 = vpack.c.b16 %v952, %v951
    %v956 = vpack.c.b16 %v954, %v953
    %v960 = vsel %vm82, %v933, 0
    %962 = vmatprep.subr.bf16.mxu0 0
    %963 = vmatpush1.bf16.msra.mxu0 0
    %964 = vmatprep.subr.bf16.mxu0 0
    %965 = vmatpush1.bf16.msra.mxu0 0
    %966 = vmatprep.subr.bf16.mxu0 0
    %967 = vmatpush1.bf16.msra.mxu0 0
    %968 = vmatprep.subr.bf16.mxu0 0
    %969 = vmatpush1.bf16.msra.mxu0 0
    %970 = vmatprep.subr.bf16.mxu0 0
    %971 = vmatpush1.bf16.msra.mxu0 0
    %972 = vmatprep.subr.bf16.mxu0 0
    %973 = vmatpush1.bf16.msra.mxu0 0
    %974 = vmatprep.subr.bf16.mxu0 0
    %975 = vmatpush1.bf16.msra.mxu0 %v956
    %976 = vmatprep.subr.bf16.mxu0 0
    %977 = vmatpush1.bf16.msra.mxu0 %v955
    %978 = vmatprep.subr.bf16.mxu0 0
    %979 = vmatpush2.bf16.msra.mxu0 0
    %980 = vmatprep.subr.bf16.mxu0 0
    %981 = vmatpush2.bf16.msra.mxu0 0
    %982 = vmatprep.subr.bf16.mxu0 0
    %983 = vmatpush2.bf16.msra.mxu0 0
    %984 = vmatprep.subr.bf16.mxu0 0
    %985 = vmatpush2.bf16.msra.mxu0 0
    %986 = vmatprep.subr.bf16.mxu0 0
    %987 = vmatpush2.bf16.msra.mxu0 0
    %988 = vmatprep.subr.bf16.mxu0 0
    %989 = vmatpush2.bf16.msra.mxu0 0
    %990 = vmatprep.subr.bf16.mxu0 0
    %991 = vmatpush2.bf16.msra.mxu0 0
    %992 = vmatprep.subr.bf16.mxu0 0
    %993 = vmatpush2.bf16.msra.mxu0 0
    %994 = vmatprep.mubr.bf16.mxu0 0
    %995 = vmatmul.mubr.bf16.gmra.mxu0 %v960
    %v996 = vpop.f32.mrf.mxu0
    %v997 = vadd.f32 %v945, %v996
    %v998 = vpop.f32.mrf.mxu0
    %v999 = vpop.f32.mrf.mxu0
    %v1000 = vadd.f32 %v945, %v999
    %v1001 = vpop.f32.mrf.mxu0
    %1002 = vdwg.mxu0
    %v1003 = vpack.c.bf16 %v997, %v997
    %v1004 = vpack.c.bf16 %v1000, %v1000
    %1006 = vrot.lane.b32.xlu0 %v1003, 112
    %v1007 = vpop.permute.xlu0 %1006
    %v1009 = vsel %vm132, %v1003, 0
    %v1012 = vsel %vm132, %v1007, 0
    %1014 = vmatprep.subr.bf16.mxu0 0
    %1015 = vmatpush1.bf16.xpose.msra.mxu0 0
    %1016 = vmatprep.subr.bf16.mxu0 0
    %1017 = vmatpush1.bf16.xpose.msra.mxu0 0
    %1018 = vmatprep.subr.bf16.mxu0 0
    %1019 = vmatpush1.bf16.xpose.msra.mxu0 0
    %1020 = vmatprep.subr.bf16.mxu0 0
    %1021 = vmatpush1.bf16.xpose.msra.mxu0 0
    %1022 = vmatprep.subr.bf16.mxu0 0
    %1023 = vmatpush1.bf16.xpose.msra.mxu0 0
    %1024 = vmatprep.subr.bf16.mxu0 0
    %1025 = vmatpush1.bf16.xpose.msra.mxu0 0
    %1026 = vmatprep.subr.bf16.mxu0 0
    %1027 = vmatpush1.bf16.xpose.msra.mxu0 0
    %1028 = vmatprep.subr.bf16.mxu0 0
    %1029 = vmatpush1.bf16.xpose.msra.mxu0 %v1012
    %1030 = vmatprep.subr.bf16.mxu0 0
    %1031 = vmatpush2.bf16.xpose.msra.mxu0 0
    %1032 = vmatprep.subr.bf16.mxu0 0
    %1033 = vmatpush2.bf16.xpose.msra.mxu0 0
    %1034 = vmatprep.subr.bf16.mxu0 0
    %1035 = vmatpush2.bf16.xpose.msra.mxu0 0
    %1036 = vmatprep.subr.bf16.mxu0 0
    %1037 = vmatpush2.bf16.xpose.msra.mxu0 0
    %1038 = vmatprep.subr.bf16.mxu0 0
    %1039 = vmatpush2.bf16.xpose.msra.mxu0 0
    %1040 = vmatprep.subr.bf16.mxu0 0
    %1041 = vmatpush2.bf16.xpose.msra.mxu0 0
    %1042 = vmatprep.subr.bf16.mxu0 0
    %1043 = vmatpush2.bf16.xpose.msra.mxu0 0
    %1044 = vmatprep.subr.bf16.mxu0 0
    %1045 = vmatpush2.bf16.xpose.msra.mxu0 0
    %1046 = vmatprep.mubr.bf16.mxu0 0
    %1047 = vmatmul.mubr.bf16.gmra.mxu0 %v1009
    %v1048 = vpop.f32.mrf.mxu0
    %v1049 = vadd.f32 0.0, %v1048
    %v1050 = vpop.f32.mrf.mxu0
    %v1051 = vpop.f32.mrf.mxu0
    %v1052 = vpop.f32.mrf.mxu0
    %1053 = vdwg.mxu0
    %1055 = vrot.lane.b32.xlu0 %v1004, 112
    %v1056 = vpop.permute.xlu0 %1055
    %v1058 = vsel %vm132, %v1004, 0
    %v1061 = vsel %vm132, %v1056, 0
    %1063 = vmatprep.subr.bf16.mxu0 0
    %1064 = vmatpush1.bf16.xpose.msra.mxu0 0
    %1065 = vmatprep.subr.bf16.mxu0 0
    %1066 = vmatpush1.bf16.xpose.msra.mxu0 0
    %1067 = vmatprep.subr.bf16.mxu0 0
    %1068 = vmatpush1.bf16.xpose.msra.mxu0 0
    %1069 = vmatprep.subr.bf16.mxu0 0
    %1070 = vmatpush1.bf16.xpose.msra.mxu0 0
    %1071 = vmatprep.subr.bf16.mxu0 0
    %1072 = vmatpush1.bf16.xpose.msra.mxu0 0
    %1073 = vmatprep.subr.bf16.mxu0 0
    %1074 = vmatpush1.bf16.xpose.msra.mxu0 0
    %1075 = vmatprep.subr.bf16.mxu0 0
    %1076 = vmatpush1.bf16.xpose.msra.mxu0 0
    %1077 = vmatprep.subr.bf16.mxu0 0
    %1078 = vmatpush1.bf16.xpose.msra.mxu0 %v1061
    %1079 = vmatprep.subr.bf16.mxu0 0
    %1080 = vmatpush2.bf16.xpose.msra.mxu0 0
    %1081 = vmatprep.subr.bf16.mxu0 0
    %1082 = vmatpush2.bf16.xpose.msra.mxu0 0
    %1083 = vmatprep.subr.bf16.mxu0 0
    %1084 = vmatpush2.bf16.xpose.msra.mxu0 0
    %1085 = vmatprep.subr.bf16.mxu0 0
    %1086 = vmatpush2.bf16.xpose.msra.mxu0 0
    %1087 = vmatprep.subr.bf16.mxu0 0
    %1088 = vmatpush2.bf16.xpose.msra.mxu0 0
    %1089 = vmatprep.subr.bf16.mxu0 0
    %1090 = vmatpush2.bf16.xpose.msra.mxu0 0
    %1091 = vmatprep.subr.bf16.mxu0 0
    %1092 = vmatpush2.bf16.xpose.msra.mxu0 0
    %1093 = vmatprep.subr.bf16.mxu0 0
    %1094 = vmatpush2.bf16.xpose.msra.mxu0 0
    %1095 = vmatprep.mubr.bf16.mxu0 0
    %1096 = vmatmul.mubr.bf16.gmra.mxu0 %v1058
    %v1097 = vpop.f32.mrf.mxu0
    %v1098 = vadd.f32 0.0, %v1097
    %v1099 = vpop.f32.mrf.mxu0
    %v1100 = vpop.f32.mrf.mxu0
    %v1101 = vpop.f32.mrf.mxu0
    %1102 = vdwg.mxu0
    %v1103 = vsel %vm240, %v1049, -1e+09
    %v1104 = vsel %vm241, %v1098, -1e+09
    %v1105 = vsel %vm132, %v1103, -inf
    %1106 = vmax.xlane.f32.xlu0 %v1105
    %v1107 = vpop.xlane.xlu0 %1106
    %v1108 = vsel %vm132, %v1104, -inf
    %1109 = vmax.xlane.f32.xlu0 %v1108
    %v1110 = vpop.xlane.xlu0 %1109
    %v1111 = vsub.f32 %v1103, %v1107
    %v1112 = vsub.f32 %v1104, %v1110
    %v1113 = vmul.f32 %v1111, 1.442695
    %v1114 = vpow.pop %v1113
    %v1115 = vmul.f32 %v1112, 1.442695
    %v1116 = vpow.pop %v1115
    %v1117 = vsel %vm132, %v1114, 0.0
    %1118 = vadd.xlane.f32.xlu0 %v1117
    %v1119 = vpop.xlane.xlu0 %1118
    %v1120 = vsel %vm132, %v1116, 0.0
    %1121 = vadd.xlane.f32.xlu0 %v1120
    %v1122 = vpop.xlane.xlu0 %1121
    %v1123 = vrcp.pop %v1119
    %v1124 = vrcp.pop %v1122
    %v1125 = vmul.f32 %v1114, %v1123
    %v1126 = vmul.f32 %v1116, %v1124
    %v1127 = vpack.c.bf16 %v1125, %v1125
    %v1128 = vpack.c.bf16 %v1126, %v1126
    %1129 = vrot.lane.b32.xlu0 %v1003, 96
    %v1130 = vpop.permute.xlu0 %1129
    %v1132 = vsel %vm132, %v1127, 0
    %v1135 = vsel %vm273, %v1130, 0
    %1137 = vmatprep.subr.bf16.mxu0 0
    %1138 = vmatpush1.bf16.msra.mxu0 0
    %1139 = vmatprep.subr.bf16.mxu0 0
    %1140 = vmatpush1.bf16.msra.mxu0 0
    %1141 = vmatprep.subr.bf16.mxu0 0
    %1142 = vmatpush1.bf16.msra.mxu0 0
    %1143 = vmatprep.subr.bf16.mxu0 0
    %1144 = vmatpush1.bf16.msra.mxu0 0
    %1145 = vmatprep.subr.bf16.mxu0 0
    %1146 = vmatpush1.bf16.msra.mxu0 0
    %1147 = vmatprep.subr.bf16.mxu0 0
    %1148 = vmatpush1.bf16.msra.mxu0 0
    %1149 = vmatprep.subr.bf16.mxu0 0
    %1150 = vmatpush1.bf16.msra.mxu0 0
    %1151 = vmatprep.subr.bf16.mxu0 0
    %1152 = vmatpush1.bf16.msra.mxu0 %v1135
    %1153 = vmatprep.subr.bf16.mxu0 0
    %1154 = vmatpush2.bf16.msra.mxu0 0
    %1155 = vmatprep.subr.bf16.mxu0 0
    %1156 = vmatpush2.bf16.msra.mxu0 0
    %1157 = vmatprep.subr.bf16.mxu0 0
    %1158 = vmatpush2.bf16.msra.mxu0 0
    %1159 = vmatprep.subr.bf16.mxu0 0
    %1160 = vmatpush2.bf16.msra.mxu0 0
    %1161 = vmatprep.subr.bf16.mxu0 0
    %1162 = vmatpush2.bf16.msra.mxu0 0
    %1163 = vmatprep.subr.bf16.mxu0 0
    %1164 = vmatpush2.bf16.msra.mxu0 0
    %1165 = vmatprep.subr.bf16.mxu0 0
    %1166 = vmatpush2.bf16.msra.mxu0 0
    %1167 = vmatprep.subr.bf16.mxu0 0
    %1168 = vmatpush2.bf16.msra.mxu0 0
    %1169 = vmatprep.mubr.bf16.mxu0 0
    %1170 = vmatmul.mubr.bf16.gmra.mxu0 %v1132
    %v1171 = vpop.f32.mrf.mxu0
    %v1172 = vadd.f32 0.0, %v1171
    %v1173 = vpop.f32.mrf.mxu0
    %v1174 = vpop.f32.mrf.mxu0
    %v1175 = vpop.f32.mrf.mxu0
    %1176 = vdwg.mxu0
    %1177 = vrot.lane.b32.xlu0 %v1004, 96
    %v1178 = vpop.permute.xlu0 %1177
    %v1180 = vsel %vm132, %v1128, 0
    %v1183 = vsel %vm273, %v1178, 0
    %1185 = vmatprep.subr.bf16.mxu0 0
    %1186 = vmatpush1.bf16.msra.mxu0 0
    %1187 = vmatprep.subr.bf16.mxu0 0
    %1188 = vmatpush1.bf16.msra.mxu0 0
    %1189 = vmatprep.subr.bf16.mxu0 0
    %1190 = vmatpush1.bf16.msra.mxu0 0
    %1191 = vmatprep.subr.bf16.mxu0 0
    %1192 = vmatpush1.bf16.msra.mxu0 0
    %1193 = vmatprep.subr.bf16.mxu0 0
    %1194 = vmatpush1.bf16.msra.mxu0 0
    %1195 = vmatprep.subr.bf16.mxu0 0
    %1196 = vmatpush1.bf16.msra.mxu0 0
    %1197 = vmatprep.subr.bf16.mxu0 0
    %1198 = vmatpush1.bf16.msra.mxu0 0
    %1199 = vmatprep.subr.bf16.mxu0 0
    %1200 = vmatpush1.bf16.msra.mxu0 %v1183
    %1201 = vmatprep.subr.bf16.mxu0 0
    %1202 = vmatpush2.bf16.msra.mxu0 0
    %1203 = vmatprep.subr.bf16.mxu0 0
    %1204 = vmatpush2.bf16.msra.mxu0 0
    %1205 = vmatprep.subr.bf16.mxu0 0
    %1206 = vmatpush2.bf16.msra.mxu0 0
    %1207 = vmatprep.subr.bf16.mxu0 0
    %1208 = vmatpush2.bf16.msra.mxu0 0
    %1209 = vmatprep.subr.bf16.mxu0 0
    %1210 = vmatpush2.bf16.msra.mxu0 0
    %1211 = vmatprep.subr.bf16.mxu0 0
    %1212 = vmatpush2.bf16.msra.mxu0 0
    %1213 = vmatprep.subr.bf16.mxu0 0
    %1214 = vmatpush2.bf16.msra.mxu0 0
    %1215 = vmatprep.subr.bf16.mxu0 0
    %1216 = vmatpush2.bf16.msra.mxu0 0
    %1217 = vmatprep.mubr.bf16.mxu0 0
    %1218 = vmatmul.mubr.bf16.gmra.mxu0 %v1180
    %v1219 = vpop.f32.mrf.mxu0
    %v1220 = vadd.f32 0.0, %v1219
    %v1221 = vpop.f32.mrf.mxu0
    %v1222 = vpop.f32.mrf.mxu0
    %v1223 = vpop.f32.mrf.mxu0
    %1224 = vdwg.mxu0
    %1225 = vst.msk [vmem:[#allocation2] sm:$0xff] %vm132, %v1172
    %1226 = vst.msk [vmem:[#allocation2 + $0x8] sm:$0xff] %vm132, %v1220
    %1227 = vrot.lane.b32.xlu0 %v1003, 120
    %v1228 = vpop.permute.xlu0 %1227
    %1229 = vrot.lane.b32.xlu0 %v1003, 104
    %v1230 = vpop.permute.xlu0 %1229
    %v1232 = vsel %vm132, %v1228, 0
    %v1235 = vsel %vm132, %v1230, 0
    %1237 = vmatprep.subr.bf16.mxu0 0
    %1238 = vmatpush1.bf16.xpose.msra.mxu0 0
    %1239 = vmatprep.subr.bf16.mxu0 0
    %1240 = vmatpush1.bf16.xpose.msra.mxu0 0
    %1241 = vmatprep.subr.bf16.mxu0 0
    %1242 = vmatpush1.bf16.xpose.msra.mxu0 0
    %1243 = vmatprep.subr.bf16.mxu0 0
    %1244 = vmatpush1.bf16.xpose.msra.mxu0 0
    %1245 = vmatprep.subr.bf16.mxu0 0
    %1246 = vmatpush1.bf16.xpose.msra.mxu0 0
    %1247 = vmatprep.subr.bf16.mxu0 0
    %1248 = vmatpush1.bf16.xpose.msra.mxu0 0
    %1249 = vmatprep.subr.bf16.mxu0 0
    %1250 = vmatpush1.bf16.xpose.msra.mxu0 0
    %1251 = vmatprep.subr.bf16.mxu0 0
    %1252 = vmatpush1.bf16.xpose.msra.mxu0 %v1235
    %1253 = vmatprep.subr.bf16.mxu0 0
    %1254 = vmatpush2.bf16.xpose.msra.mxu0 0
    %1255 = vmatprep.subr.bf16.mxu0 0
    %1256 = vmatpush2.bf16.xpose.msra.mxu0 0
    %1257 = vmatprep.subr.bf16.mxu0 0
    %1258 = vmatpush2.bf16.xpose.msra.mxu0 0
    %1259 = vmatprep.subr.bf16.mxu0 0
    %1260 = vmatpush2.bf16.xpose.msra.mxu0 0
    %1261 = vmatprep.subr.bf16.mxu0 0
    %1262 = vmatpush2.bf16.xpose.msra.mxu0 0
    %1263 = vmatprep.subr.bf16.mxu0 0
    %1264 = vmatpush2.bf16.xpose.msra.mxu0 0
    %1265 = vmatprep.subr.bf16.mxu0 0
    %1266 = vmatpush2.bf16.xpose.msra.mxu0 0
    %1267 = vmatprep.subr.bf16.mxu0 0
    %1268 = vmatpush2.bf16.xpose.msra.mxu0 0
    %1269 = vmatprep.mubr.bf16.mxu0 0
    %1270 = vmatmul.mubr.bf16.gmra.mxu0 %v1232
    %v1271 = vpop.f32.mrf.mxu0
    %v1272 = vadd.f32 0.0, %v1271
    %v1273 = vpop.f32.mrf.mxu0
    %v1274 = vpop.f32.mrf.mxu0
    %v1275 = vpop.f32.mrf.mxu0
    %1276 = vdwg.mxu0
    %1277 = vrot.lane.b32.xlu0 %v1004, 120
    %v1278 = vpop.permute.xlu0 %1277
    %1279 = vrot.lane.b32.xlu0 %v1004, 104
    %v1280 = vpop.permute.xlu0 %1279
    %v1282 = vsel %vm132, %v1278, 0
    %v1285 = vsel %vm132, %v1280, 0
    %1287 = vmatprep.subr.bf16.mxu0 0
    %1288 = vmatpush1.bf16.xpose.msra.mxu0 0
    %1289 = vmatprep.subr.bf16.mxu0 0
    %1290 = vmatpush1.bf16.xpose.msra.mxu0 0
    %1291 = vmatprep.subr.bf16.mxu0 0
    %1292 = vmatpush1.bf16.xpose.msra.mxu0 0
    %1293 = vmatprep.subr.bf16.mxu0 0
    %1294 = vmatpush1.bf16.xpose.msra.mxu0 0
    %1295 = vmatprep.subr.bf16.mxu0 0
    %1296 = vmatpush1.bf16.xpose.msra.mxu0 0
    %1297 = vmatprep.subr.bf16.mxu0 0
    %1298 = vmatpush1.bf16.xpose.msra.mxu0 0
    %1299 = vmatprep.subr.bf16.mxu0 0
    %1300 = vmatpush1.bf16.xpose.msra.mxu0 0
    %1301 = vmatprep.subr.bf16.mxu0 0
    %1302 = vmatpush1.bf16.xpose.msra.mxu0 %v1285
    %1303 = vmatprep.subr.bf16.mxu0 0
    %1304 = vmatpush2.bf16.xpose.msra.mxu0 0
    %1305 = vmatprep.subr.bf16.mxu0 0
    %1306 = vmatpush2.bf16.xpose.msra.mxu0 0
    %1307 = vmatprep.subr.bf16.mxu0 0
    %1308 = vmatpush2.bf16.xpose.msra.mxu0 0
    %1309 = vmatprep.subr.bf16.mxu0 0
    %1310 = vmatpush2.bf16.xpose.msra.mxu0 0
    %1311 = vmatprep.subr.bf16.mxu0 0
    %1312 = vmatpush2.bf16.xpose.msra.mxu0 0
    %1313 = vmatprep.subr.bf16.mxu0 0
    %1314 = vmatpush2.bf16.xpose.msra.mxu0 0
    %1315 = vmatprep.subr.bf16.mxu0 0
    %1316 = vmatpush2.bf16.xpose.msra.mxu0 0
    %1317 = vmatprep.subr.bf16.mxu0 0
    %1318 = vmatpush2.bf16.xpose.msra.mxu0 0
    %1319 = vmatprep.mubr.bf16.mxu0 0
    %1320 = vmatmul.mubr.bf16.gmra.mxu0 %v1282
    %v1321 = vpop.f32.mrf.mxu0
    %v1322 = vadd.f32 0.0, %v1321
    %v1323 = vpop.f32.mrf.mxu0
    %v1324 = vpop.f32.mrf.mxu0
    %v1325 = vpop.f32.mrf.mxu0
    %1326 = vdwg.mxu0
    %v1327 = vsel %vm240, %v1272, -1e+09
    %v1328 = vsel %vm241, %v1322, -1e+09
    %v1329 = vsel %vm132, %v1327, -inf
    %1330 = vmax.xlane.f32.xlu0 %v1329
    %v1331 = vpop.xlane.xlu0 %1330
    %v1332 = vsel %vm132, %v1328, -inf
    %1333 = vmax.xlane.f32.xlu0 %v1332
    %v1334 = vpop.xlane.xlu0 %1333
    %v1335 = vsub.f32 %v1327, %v1331
    %v1336 = vsub.f32 %v1328, %v1334
    %v1337 = vmul.f32 %v1335, 1.442695
    %v1338 = vpow.pop %v1337
    %v1339 = vmul.f32 %v1336, 1.442695
    %v1340 = vpow.pop %v1339
    %v1341 = vsel %vm132, %v1338, 0.0
    %1342 = vadd.xlane.f32.xlu0 %v1341
    %v1343 = vpop.xlane.xlu0 %1342
    %v1344 = vsel %vm132, %v1340, 0.0
    %1345 = vadd.xlane.f32.xlu0 %v1344
    %v1346 = vpop.xlane.xlu0 %1345
    %v1347 = vrcp.pop %v1343
    %v1348 = vrcp.pop %v1346
    %v1349 = vmul.f32 %v1338, %v1347
    %v1350 = vmul.f32 %v1340, %v1348
    %v1351 = vpack.c.bf16 %v1349, %v1349
    %v1352 = vpack.c.bf16 %v1350, %v1350
    %1353 = vrot.lane.b32.xlu0 %v1003, 88
    %v1354 = vpop.permute.xlu0 %1353
    %v1356 = vsel %vm132, %v1351, 0
    %v1359 = vsel %vm273, %v1354, 0
    %1361 = vmatprep.subr.bf16.mxu0 0
    %1362 = vmatpush1.bf16.msra.mxu0 0
    %1363 = vmatprep.subr.bf16.mxu0 0
    %1364 = vmatpush1.bf16.msra.mxu0 0
    %1365 = vmatprep.subr.bf16.mxu0 0
    %1366 = vmatpush1.bf16.msra.mxu0 0
    %1367 = vmatprep.subr.bf16.mxu0 0
    %1368 = vmatpush1.bf16.msra.mxu0 0
    %1369 = vmatprep.subr.bf16.mxu0 0
    %1370 = vmatpush1.bf16.msra.mxu0 0
    %1371 = vmatprep.subr.bf16.mxu0 0
    %1372 = vmatpush1.bf16.msra.mxu0 0
    %1373 = vmatprep.subr.bf16.mxu0 0
    %1374 = vmatpush1.bf16.msra.mxu0 0
    %1375 = vmatprep.subr.bf16.mxu0 0
    %1376 = vmatpush1.bf16.msra.mxu0 %v1359
    %1377 = vmatprep.subr.bf16.mxu0 0
    %1378 = vmatpush2.bf16.msra.mxu0 0
    %1379 = vmatprep.subr.bf16.mxu0 0
    %1380 = vmatpush2.bf16.msra.mxu0 0
    %1381 = vmatprep.subr.bf16.mxu0 0
    %1382 = vmatpush2.bf16.msra.mxu0 0
    %1383 = vmatprep.subr.bf16.mxu0 0
    %1384 = vmatpush2.bf16.msra.mxu0 0
    %1385 = vmatprep.subr.bf16.mxu0 0
    %1386 = vmatpush2.bf16.msra.mxu0 0
    %1387 = vmatprep.subr.bf16.mxu0 0
    %1388 = vmatpush2.bf16.msra.mxu0 0
    %1389 = vmatprep.subr.bf16.mxu0 0
    %1390 = vmatpush2.bf16.msra.mxu0 0
    %1391 = vmatprep.subr.bf16.mxu0 0
    %1392 = vmatpush2.bf16.msra.mxu0 0
    %1393 = vmatprep.mubr.bf16.mxu0 0
    %1394 = vmatmul.mubr.bf16.gmra.mxu0 %v1356
    %v1395 = vpop.f32.mrf.mxu0
    %v1396 = vadd.f32 0.0, %v1395
    %v1397 = vpop.f32.mrf.mxu0
    %v1398 = vpop.f32.mrf.mxu0
    %v1399 = vpop.f32.mrf.mxu0
    %1400 = vdwg.mxu0
    %1401 = vrot.lane.b32.xlu0 %v1004, 88
    %v1402 = vpop.permute.xlu0 %1401
    %v1404 = vsel %vm132, %v1352, 0
    %v1407 = vsel %vm273, %v1402, 0
    %1409 = vmatprep.subr.bf16.mxu0 0
    %1410 = vmatpush1.bf16.msra.mxu0 0
    %1411 = vmatprep.subr.bf16.mxu0 0
    %1412 = vmatpush1.bf16.msra.mxu0 0
    %1413 = vmatprep.subr.bf16.mxu0 0
    %1414 = vmatpush1.bf16.msra.mxu0 0
    %1415 = vmatprep.subr.bf16.mxu0 0
    %1416 = vmatpush1.bf16.msra.mxu0 0
    %1417 = vmatprep.subr.bf16.mxu0 0
    %1418 = vmatpush1.bf16.msra.mxu0 0
    %1419 = vmatprep.subr.bf16.mxu0 0
    %1420 = vmatpush1.bf16.msra.mxu0 0
    %1421 = vmatprep.subr.bf16.mxu0 0
    %1422 = vmatpush1.bf16.msra.mxu0 0
    %1423 = vmatprep.subr.bf16.mxu0 0
    %1424 = vmatpush1.bf16.msra.mxu0 %v1407
    %1425 = vmatprep.subr.bf16.mxu0 0
    %1426 = vmatpush2.bf16.msra.mxu0 0
    %1427 = vmatprep.subr.bf16.mxu0 0
    %1428 = vmatpush2.bf16.msra.mxu0 0
    %1429 = vmatprep.subr.bf16.mxu0 0
    %1430 = vmatpush2.bf16.msra.mxu0 0
    %1431 = vmatprep.subr.bf16.mxu0 0
    %1432 = vmatpush2.bf16.msra.mxu0 0
    %1433 = vmatprep.subr.bf16.mxu0 0
    %1434 = vmatpush2.bf16.msra.mxu0 0
    %1435 = vmatprep.subr.bf16.mxu0 0
    %1436 = vmatpush2.bf16.msra.mxu0 0
    %1437 = vmatprep.subr.bf16.mxu0 0
    %1438 = vmatpush2.bf16.msra.mxu0 0
    %1439 = vmatprep.subr.bf16.mxu0 0
    %1440 = vmatpush2.bf16.msra.mxu0 0
    %1441 = vmatprep.mubr.bf16.mxu0 0
    %1442 = vmatmul.mubr.bf16.gmra.mxu0 %v1404
    %v1443 = vpop.f32.mrf.mxu0
    %v1444 = vadd.f32 0.0, %v1443
    %v1445 = vpop.f32.mrf.mxu0
    %v1446 = vpop.f32.mrf.mxu0
    %v1447 = vpop.f32.mrf.mxu0
    %1448 = vdwg.mxu0
    %1451 = vrot.lane.b32.xlu0 %v1396, 8
    %v1452 = vpop.permute.xlu0 %1451
    %1453 = vrot.lane.b32.xlu0 %v1444, 8
    %v1454 = vpop.permute.xlu0 %1453
    %1457 = vst.msk [vmem:[#allocation2] sm:$0xff] %vm597, %v1452
    %1458 = vst.msk [vmem:[#allocation2 + $0x8] sm:$0xff] %vm597, %v1454
    %v1459 = vld [vmem:[#allocation2] sm:$0xff]
    %v1460 = vld [vmem:[#allocation2 + $0x8] sm:$0xff]
    %v1461 = vpack.c.bf16 %v1460, %v1459
    %s1462 = scalar_lea.vmem %s5, 8
    %v1463 = vld [vmem:[%s1462] sm:$0xf]
    %v1464 = vld [vmem:[%s1462 + $0x4] sm:$0xf]
    %s1465 = scalar_lea.vmem %s6, 1
    %v1466 = vld [vmem:[%s1465] sm:$0x1]
    %v1468 = vlaneseq
    %v1469 = vshrl.u32 %v1468, 7
    %v1470 = vsub.s32 0, %v1469
    %v1471 = vrot.slane %v1466, %v1470
    %v1475 = vunpack.c.l.b16 %v1463
    %v1476 = vunpack.c.l.b16 %v1464
    %v1477 = vpack.c.b16 %v1476, %v1475
    %v1480 = vsel %vm618, %v1461, 0
    %1482 = vmatprep.subr.bf16.mxu0 0
    %1483 = vmatpush1.bf16.msra.mxu0 0
    %1484 = vmatprep.subr.bf16.mxu0 0
    %1485 = vmatpush1.bf16.msra.mxu0 0
    %1486 = vmatprep.subr.bf16.mxu0 0
    %1487 = vmatpush1.bf16.msra.mxu0 0
    %1488 = vmatprep.subr.bf16.mxu0 0
    %1489 = vmatpush1.bf16.msra.mxu0 0
    %1490 = vmatprep.subr.bf16.mxu0 0
    %1491 = vmatpush1.bf16.msra.mxu0 0
    %1492 = vmatprep.subr.bf16.mxu0 0
    %1493 = vmatpush1.bf16.msra.mxu0 0
    %1494 = vmatprep.subr.bf16.mxu0 0
    %1495 = vmatpush1.bf16.msra.mxu0 0
    %1496 = vmatprep.subr.bf16.mxu0 0
    %1497 = vmatpush1.bf16.msra.mxu0 %v1477
    %1498 = vmatprep.subr.bf16.mxu0 0
    %1499 = vmatpush2.bf16.msra.mxu0 0
    %1500 = vmatprep.subr.bf16.mxu0 0
    %1501 = vmatpush2.bf16.msra.mxu0 0
    %1502 = vmatprep.subr.bf16.mxu0 0
    %1503 = vmatpush2.bf16.msra.mxu0 0
    %1504 = vmatprep.subr.bf16.mxu0 0
    %1505 = vmatpush2.bf16.msra.mxu0 0
    %1506 = vmatprep.subr.bf16.mxu0 0
    %1507 = vmatpush2.bf16.msra.mxu0 0
    %1508 = vmatprep.subr.bf16.mxu0 0
    %1509 = vmatpush2.bf16.msra.mxu0 0
    %1510 = vmatprep.subr.bf16.mxu0 0
    %1511 = vmatpush2.bf16.msra.mxu0 0
    %1512 = vmatprep.subr.bf16.mxu0 0
    %1513 = vmatpush2.bf16.msra.mxu0 0
    %1514 = vmatprep.mubr.bf16.mxu0 0
    %1515 = vmatmul.mubr.bf16.gmra.mxu0 %v1480
    %v1516 = vpop.f32.mrf.mxu0
    %v1517 = vadd.f32 %v1471, %v1516
    %v1518 = vpop.f32.mrf.mxu0
    %v1519 = vpop.f32.mrf.mxu0
    %v1520 = vadd.f32 %v1471, %v1519
    %v1521 = vpop.f32.mrf.mxu0
    %1522 = vdwg.mxu0
    %v1523 = vadd.f32 %v1517, %v931
    %v1524 = vadd.f32 %v1520, %v932
    %s1525 = scalar_lea.vmem %s7, 1
    %v1526 = vld [vmem:[%s1525] sm:$0x1]
    %s1527 = scalar_lea.vmem %s8, 1
    %v1528 = vld [vmem:[%s1527] sm:$0x1]
    %v1529 = vsel %vm82, %v1523, 0.0
    %1530 = vadd.xlane.f32.xlu0 %v1529
    %v1531 = vpop.xlane.xlu0 %1530
    %v1532 = vsel %vm82, %v1524, 0.0
    %1533 = vadd.xlane.f32.xlu0 %v1532
    %v1534 = vpop.xlane.xlu0 %1533
    %v1535 = vmul.f32 %v1531, %v673
    %v1536 = vmul.f32 %v1534, %v673
    %v1537 = vmul.f32 %v1523, %v1523
    %v1538 = vmul.f32 %v1524, %v1524
    %v1539 = vsel %vm82, %v1537, 0.0
    %1540 = vadd.xlane.f32.xlu0 %v1539
    %v1541 = vpop.xlane.xlu0 %1540
    %v1542 = vsel %vm82, %v1538, 0.0
    %1543 = vadd.xlane.f32.xlu0 %v1542
    %v1544 = vpop.xlane.xlu0 %1543
    %v1545 = vmul.f32 %v1541, %v673
    %v1546 = vmul.f32 %v1544, %v673
    %v1547 = vmul.f32 %v1535, %v1535
    %v1548 = vmul.f32 %v1536, %v1536
    %v1549 = vsub.f32 %v1545, %v1547
    %v1550 = vsub.f32 %v1546, %v1548
    %v1551 = vadd.f32 %v1549, 1e-05
    %v1552 = vadd.f32 %v1550, 1e-05
    %v1553 = vrsqrt.pop %v1551
    %v1554 = vrsqrt.pop %v1552
    %v1555 = vsub.f32 %v1523, %v1535
    %v1556 = vsub.f32 %v1524, %v1536
    %v1557 = vmul.f32 %v1555, %v1553
    %v1558 = vmul.f32 %v1556, %v1554
    %v1560 = vlaneseq
    %v1561 = vshrl.u32 %v1560, 7
    %v1562 = vsub.s32 0, %v1561
    %v1563 = vrot.slane %v1526, %v1562
    %v1565 = vmul.f32 %v1557, %v1563
    %v1566 = vmul.f32 %v1558, %v1563
    %v1568 = vlaneseq
    %v1569 = vshrl.u32 %v1568, 7
    %v1570 = vsub.s32 0, %v1569
    %v1571 = vrot.slane %v1528, %v1570
    %v1573 = vadd.f32 %v1565, %v1571
    %v1574 = vadd.f32 %v1566, %v1571
    %v1575 = vmul.f32 %v1573, %v717
    %v1576 = vmul.f32 %v1574, %v722
    %v1577 = vpack.c.bf16 %v1576, %v1575
    %s1578 = scalar_lea.vmem %s9, 16
    %v1579 = vld [vmem:[%s1578] sm:$0xf]
    %v1580 = vld [vmem:[%s1578 + $0x4] sm:$0xf]
    %v1581 = vld [vmem:[%s1578 + $0x8] sm:$0xf]
    %v1582 = vld [vmem:[%s1578 + $0xc] sm:$0xf]
    %s1583 = scalar_lea.vmem %s10, 1
    %v1584 = vld [vmem:[%s1583] sm:$0x1]
    %v1586 = vlaneseq
    %v1587 = vshrl.u32 %v1586, 7
    %v1588 = vsub.s32 0, %v1587
    %v1589 = vrot.slane %v1584, %v1588
    %v1595 = vunpack.c.l.b16 %v1579
    %v1596 = vunpack.c.l.b16 %v1580
    %v1597 = vunpack.c.l.b16 %v1581
    %v1598 = vunpack.c.l.b16 %v1582
    %v1599 = vpack.c.b16 %v1596, %v1595
    %v1600 = vpack.c.b16 %v1598, %v1597
    %v1604 = vsel %vm82, %v1577, 0
    %1606 = vmatprep.subr.bf16.mxu0 0
    %1607 = vmatpush1.bf16.msra.mxu0 0
    %1608 = vmatprep.subr.bf16.mxu0 0
    %1609 = vmatpush1.bf16.msra.mxu0 0
    %1610 = vmatprep.subr.bf16.mxu0 0
    %1611 = vmatpush1.bf16.msra.mxu0 0
    %1612 = vmatprep.subr.bf16.mxu0 0
    %1613 = vmatpush1.bf16.msra.mxu0 0
    %1614 = vmatprep.subr.bf16.mxu0 0
    %1615 = vmatpush1.bf16.msra.mxu0 0
    %1616 = vmatprep.subr.bf16.mxu0 0
    %1617 = vmatpush1.bf16.msra.mxu0 0
    %1618 = vmatprep.subr.bf16.mxu0 0
    %1619 = vmatpush1.bf16.msra.mxu0 %v1600
    %1620 = vmatprep.subr.bf16.mxu0 0
    %1621 = vmatpush1.bf16.msra.mxu0 %v1599
    %1622 = vmatprep.subr.bf16.mxu0 0
    %1623 = vmatpush2.bf16.msra.mxu0 0
    %1624 = vmatprep.subr.bf16.mxu0 0
    %1625 = vmatpush2.bf16.msra.mxu0 0
    %1626 = vmatprep.subr.bf16.mxu0 0
    %1627 = vmatpush2.bf16.msra.mxu0 0
    %1628 = vmatprep.subr.bf16.mxu0 0
    %1629 = vmatpush2.bf16.msra.mxu0 0
    %1630 = vmatprep.subr.bf16.mxu0 0
    %1631 = vmatpush2.bf16.msra.mxu0 0
    %1632 = vmatprep.subr.bf16.mxu0 0
    %1633 = vmatpush2.bf16.msra.mxu0 0
    %1634 = vmatprep.subr.bf16.mxu0 0
    %1635 = vmatpush2.bf16.msra.mxu0 0
    %1636 = vmatprep.subr.bf16.mxu0 0
    %1637 = vmatpush2.bf16.msra.mxu0 0
    %1638 = vmatprep.mubr.bf16.mxu0 0
    %1639 = vmatmul.mubr.bf16.gmra.mxu0 %v1604
    %v1640 = vpop.f32.mrf.mxu0
    %v1641 = vadd.f32 %v1589, %v1640
    %v1642 = vpop.f32.mrf.mxu0
    %v1643 = vpop.f32.mrf.mxu0
    %v1644 = vadd.f32 %v1589, %v1643
    %v1645 = vpop.f32.mrf.mxu0
    %1646 = vdwg.mxu0
    %v1647 = vmax.f32 %v1641, 0.0
    %v1648 = vmax.f32 %v1644, 0.0
    %v1649 = vpack.c.bf16 %v1648, %v1647
    %s1650 = scalar_lea.vmem %s11, 32
    %v1651 = vld [vmem:[%s1650] sm:$0xf]
    %v1652 = vld [vmem:[%s1650 + $0x4] sm:$0xf]
    %v1653 = vld [vmem:[%s1650 + $0x8] sm:$0xf]
    %v1654 = vld [vmem:[%s1650 + $0xc] sm:$0xf]
    %v1655 = vld [vmem:[%s1650 + $0x10] sm:$0xf]
    %v1656 = vld [vmem:[%s1650 + $0x14] sm:$0xf]
    %v1657 = vld [vmem:[%s1650 + $0x18] sm:$0xf]
    %v1658 = vld [vmem:[%s1650 + $0x1c] sm:$0xf]
    %s1659 = scalar_lea.vmem %s12, 1
    %v1660 = vld [vmem:[%s1659] sm:$0x1]
    %v1662 = vlaneseq
    %v1663 = vshrl.u32 %v1662, 7
    %v1664 = vsub.s32 0, %v1663
    %v1665 = vrot.slane %v1660, %v1664
    %v1675 = vunpack.c.l.b16 %v1651
    %v1676 = vunpack.c.l.b16 %v1652
    %v1677 = vunpack.c.l.b16 %v1653
    %v1678 = vunpack.c.l.b16 %v1654
    %v1679 = vunpack.c.l.b16 %v1655
    %v1680 = vunpack.c.l.b16 %v1656
    %v1681 = vunpack.c.l.b16 %v1657
    %v1682 = vunpack.c.l.b16 %v1658
    %v1683 = vpack.c.b16 %v1676, %v1675
    %v1684 = vpack.c.b16 %v1678, %v1677
    %v1685 = vpack.c.b16 %v1680, %v1679
    %v1686 = vpack.c.b16 %v1682, %v1681
    %v1692 = vsel %vm836, %v1649, 0
    %1694 = vmatprep.subr.bf16.mxu0 0
    %1695 = vmatpush1.bf16.msra.mxu0 0
    %1696 = vmatprep.subr.bf16.mxu0 0
    %1697 = vmatpush1.bf16.msra.mxu0 0
    %1698 = vmatprep.subr.bf16.mxu0 0
    %1699 = vmatpush1.bf16.msra.mxu0 0
    %1700 = vmatprep.subr.bf16.mxu0 0
    %1701 = vmatpush1.bf16.msra.mxu0 0
    %1702 = vmatprep.subr.bf16.mxu0 0
    %1703 = vmatpush1.bf16.msra.mxu0 %v1686
    %1704 = vmatprep.subr.bf16.mxu0 0
    %1705 = vmatpush1.bf16.msra.mxu0 %v1685
    %1706 = vmatprep.subr.bf16.mxu0 0
    %1707 = vmatpush1.bf16.msra.mxu0 %v1684
    %1708 = vmatprep.subr.bf16.mxu0 0
    %1709 = vmatpush1.bf16.msra.mxu0 %v1683
    %1710 = vmatprep.subr.bf16.mxu0 0
    %1711 = vmatpush2.bf16.msra.mxu0 0
    %1712 = vmatprep.subr.bf16.mxu0 0
    %1713 = vmatpush2.bf16.msra.mxu0 0
    %1714 = vmatprep.subr.bf16.mxu0 0
    %1715 = vmatpush2.bf16.msra.mxu0 0
    %1716 = vmatprep.subr.bf16.mxu0 0
    %1717 = vmatpush2.bf16.msra.mxu0 0
    %1718 = vmatprep.subr.bf16.mxu0 0
    %1719 = vmatpush2.bf16.msra.mxu0 0
    %1720 = vmatprep.subr.bf16.mxu0 0
    %1721 = vmatpush2.bf16.msra.mxu0 0
    %1722 = vmatprep.subr.bf16.mxu0 0
    %1723 = vmatpush2.bf16.msra.mxu0 0
    %1724 = vmatprep.subr.bf16.mxu0 0
    %1725 = vmatpush2.bf16.msra.mxu0 0
    %1726 = vmatprep.mubr.bf16.mxu0 0
    %1727 = vmatmul.mubr.bf16.gmra.mxu0 %v1692
    %v1728 = vpop.f32.mrf.mxu0
    %v1729 = vadd.f32 %v1665, %v1728
    %v1730 = vpop.f32.mrf.mxu0
    %v1731 = vpop.f32.mrf.mxu0
    %v1732 = vadd.f32 %v1665, %v1731
    %v1733 = vpop.f32.mrf.mxu0
    %1734 = vdwg.mxu0
    %v1735 = vadd.f32 %v1729, %v1575
    %v1736 = vadd.f32 %v1732, %v1576
    %s1737 = scalar_lea.vmem %s13, 1
    %v1738 = vld [vmem:[%s1737] sm:$0x1]
    %s1739 = scalar_lea.vmem %s14, 1
    %v1740 = vld [vmem:[%s1739] sm:$0x1]
    %v1741 = vsel %vm82, %v1735, 0.0
    %1742 = vadd.xlane.f32.xlu0 %v1741
    %v1743 = vpop.xlane.xlu0 %1742
    %v1744 = vsel %vm82, %v1736, 0.0
    %1745 = vadd.xlane.f32.xlu0 %v1744
    %v1746 = vpop.xlane.xlu0 %1745
    %v1747 = vmul.f32 %v1743, %v673
    %v1748 = vmul.f32 %v1746, %v673
    %v1749 = vmul.f32 %v1735, %v1735
    %v1750 = vmul.f32 %v1736, %v1736
    %v1751 = vsel %vm82, %v1749, 0.0
    %1752 = vadd.xlane.f32.xlu0 %v1751
    %v1753 = vpop.xlane.xlu0 %1752
    %v1754 = vsel %vm82, %v1750, 0.0
    %1755 = vadd.xlane.f32.xlu0 %v1754
    %v1756 = vpop.xlane.xlu0 %1755
    %v1757 = vmul.f32 %v1753, %v673
    %v1758 = vmul.f32 %v1756, %v673
    %v1759 = vmul.f32 %v1747, %v1747
    %v1760 = vmul.f32 %v1748, %v1748
    %v1761 = vsub.f32 %v1757, %v1759
    %v1762 = vsub.f32 %v1758, %v1760
    %v1763 = vadd.f32 %v1761, 1e-05
    %v1764 = vadd.f32 %v1762, 1e-05
    %v1765 = vrsqrt.pop %v1763
    %v1766 = vrsqrt.pop %v1764
    %v1767 = vsub.f32 %v1735, %v1747
    %v1768 = vsub.f32 %v1736, %v1748
    %v1769 = vmul.f32 %v1767, %v1765
    %v1770 = vmul.f32 %v1768, %v1766
    %v1772 = vlaneseq
    %v1773 = vshrl.u32 %v1772, 7
    %v1774 = vsub.s32 0, %v1773
    %v1775 = vrot.slane %v1738, %v1774
    %v1777 = vmul.f32 %v1769, %v1775
    %v1778 = vmul.f32 %v1770, %v1775
    %v1780 = vlaneseq
    %v1781 = vshrl.u32 %v1780, 7
    %v1782 = vsub.s32 0, %v1781
    %v1783 = vrot.slane %v1740, %v1782
    %v1785 = vadd.f32 %v1777, %v1783
    %v1786 = vadd.f32 %v1778, %v1783
    %v1787 = vmul.f32 %v1785, %v717
    %v1788 = vmul.f32 %v1786, %v722
    %v1789 = vsel %vm82, %v1787, -inf
    %v1790 = vrot.slane %v1789, 4
    %v1791 = vmax.f32 %v1789, %v1790
    %v1792 = vrot.slane %v1791, 2
    %v1793 = vmax.f32 %v1791, %v1792
    %v1794 = vrot.slane %v1793, 1
    %v1795 = vmax.f32 %v1793, %v1794
    %vm1796 = vcmask 253952
    %1797 = vst.msk [vmem:[#allocation3] sm:$0x1] %vm1796, %v1795
    %v1798 = vsel %vm82, %v1788, -inf
    %v1799 = vrot.slane %v1798, 4
    %v1800 = vmax.f32 %v1798, %v1799
    %v1801 = vrot.slane %v1800, 2
    %v1802 = vmax.f32 %v1800, %v1801
    %v1803 = vrot.slane %v1802, 1
    %v1804 = vmax.f32 %v1802, %v1803
    %1805 = vst.msk [vmem:[#allocation3 + $0x1] sm:$0x1] %vm1796, %v1804
    // Predicated region
    $region62: #{transfo_enc_forward.1} parent=1 // pred_check
      _
    $region63: #{transfo_enc_forward.1} parent=1 // pred_check_branch
      %1807 = sbr.rel (0) target = $region65
    $region64: #{transfo_enc_forward.1} parent=1 // pred_region
      %s1809 = ssub.s32 32, 32
      %1810 = vsyncadd [#allocation4], %s1809
      %s1812 = sshll.u32 [#allocation3], 4
      %s1813 = int_to_ptr.vmem [resolvable:$true] %s1812
      %1815 = dma.vmem_to_hbm [thread:$0]  %s1813, 32, %s15, [#allocation4]
    $region65: #{transfo_enc_forward.1} parent=1 // pred_fallthru
      _
    // Predicated region
    $region66: #{transfo_enc_forward.1} parent=1 // pred_check
      _
    $region67: #{transfo_enc_forward.1} parent=1 // pred_check_branch
      %1817 = sbr.rel (0) target = $region69
    $region68: #{transfo_enc_forward.1} parent=1 // pred_region
      %1818 = dma.done [#allocation4], 32
    $region69: #{transfo_enc_forward.1} parent=1 // pred_fallthru
      _
    %1819 = vsyncpa [#allocation4], 1

</llo_original>
